<compile_context>
chip_gen: v7x
topology: tpu7x:2x2x1
jax: 0.10.0
libtpu: 0.0.40
codegen_flags: <defaults>
</compile_context>

<pallas_src>
import math

import jax
import jax.numpy as jnp
from jax import lax
from jax.experimental import pallas as pl
from jax.experimental.pallas import tpu as pltpu

EPS = 1e-5            # torch.nn.InstanceNorm2d default eps
LANE = 128
K1 = 36               # stage-1 im2col K: 3*3*(3 img channels + 1 ones channel)
K1_PAD = 40           # padded to a sublane multiple
MAX_CHUNK_M = 2048    # max output sites per in-kernel row chunk (bounds f32 acc)


def _round_up(x, m):
    return (x + m - 1) // m * m


def _row_chunk(rows, width, max_m=MAX_CHUNK_M):
    """Largest divisor of `rows` (by halving) such that rows*width per chunk <= max_m."""
    tr = rows
    while tr % 2 == 0 and tr * width > max_m:
        tr //= 2
    return tr


def _vmem_limit_bytes():
    # ~80% of physical VMEM: ~51 MiB on v7x (64 MiB parts), ~102 MiB on v5e/v6e.
    cap = 128 * 1024 * 1024
    try:
        info = pltpu.get_tpu_info()
        cap = int(getattr(info, "vmem_capacity_bytes", cap) or cap)
    except Exception:
        pass
    return int(cap * 0.8)


# ------------------------------- fused kernel -------------------------------

def _make_kernel(num_down, h, w, cpad):
    """Kernel doing all `num_down` (conv3x3 s2 p1 -> InstanceNorm -> ReLU) stages
    for one sample, with intermediates resident in VMEM scratch."""

    def kernel(*refs):
        x_ref = refs[0]                       # (1, (H/2)*(W/2), K1_PAD) stage-1 im2col
        w_refs = refs[1:1 + num_down]         # stage weights
        o_ref = refs[1 + num_down]            # (1, H/ps, W/ps, cpad)
        bufs = refs[2 + num_down:]            # per-stage padded NHWC activations
        dt = bufs[0].dtype

        # Zero the padding ring of every inter-stage buffer (scratch is not
        # zero-initialised).  Interiors are fully overwritten below.
        for s in range(num_down):
            hs, wsd = h >> (s + 1), w >> (s + 1)
            buf = bufs[s]
            zrow = jnp.zeros((1, wsd + 2, cpad), dt)
            buf[pl.ds(0, 1), pl.ds(0, wsd + 2), :] = zrow
            buf[pl.ds(hs + 1, 1), pl.ds(0, wsd + 2), :] = zrow
            zcol = jnp.zeros((hs + 2, 1, cpad), dt)
            buf[pl.ds(0, hs + 2), pl.ds(0, 1), :] = zcol
            buf[pl.ds(0, hs + 2), pl.ds(wsd + 1, 1), :] = zcol

        def instance_norm_relu(src_buf, ch_sum, ch_ssq, hs, wsd, tr, last):
            # One-pass (E[x^2]-E[x]^2) variance, accumulated in f32 from the f32
            # matmul accumulators; clamped >= 0.  (A two-pass finalize would be
            # more robust to cancellation; acceptable for typical activations.)
            inv_n = 1.0 / float(hs * wsd)
            mean = ch_sum * inv_n
            var = jnp.maximum(ch_ssq * inv_n - mean * mean, 0.0)
            inv_std = lax.rsqrt(var + EPS)
            mean = mean.reshape(1, 1, cpad)
            inv_std = inv_std.reshape(1, 1, cpad)
            for r0 in range(0, hs, tr):
                xc = src_buf[pl.ds(1 + r0, tr), pl.ds(1, wsd), :].astype(jnp.float32)
                yc = jnp.maximum((xc - mean) * inv_std, 0.0)
                if last:
                    o_ref[0, pl.ds(r0, tr), :, :] = yc.astype(o_ref.dtype)
                else:
                    # In-place: interior only, so the zero padding ring stays zero.
                    src_buf[pl.ds(1 + r0, tr), pl.ds(1, wsd), :] = yc.astype(src_buf.dtype)

        # ----------------- stage 1: one dense matmul per row chunk ------------
        ho, wo = h // 2, w // 2
        buf1 = bufs[0]
        w1 = w_refs[0][...]                                   # (K1_PAD, cpad)
        tr = _row_chunk(ho, wo)
        ch_sum = jnp.zeros((1, cpad), jnp.float32)
        ch_ssq = jnp.zeros((1, cpad), jnp.float32)
        for r0 in range(0, ho, tr):
            a = x_ref[0, pl.ds(r0 * wo, tr * wo), :]          # (tr*wo, K1_PAD)
            acc = jnp.dot(a, w1, preferred_element_type=jnp.float32)
            ch_sum = ch_sum + jnp.sum(acc, axis=0, keepdims=True)
            ch_ssq = ch_ssq + jnp.sum(acc * acc, axis=0, keepdims=True)
            # Write pre-padded for the next stage (interior starts at (1, 1)).
            buf1[pl.ds(1 + r0, tr), pl.ds(1, wo), :] = (
                acc.reshape(tr, wo, cpad).astype(dt))
        instance_norm_relu(buf1, ch_sum, ch_ssq, ho, wo, tr, last=(num_down == 1))

        # ----------------- stages 2..num_down: 9 taps x K=cpad ----------------
        for s in range(1, num_down):
            src, dst = bufs[s - 1], bufs[s]
            hin, win = h >> s, w >> s
            ho, wo = hin // 2, win // 2
            wk = w_refs[s]                                    # (3, 3, cpad, cpad)
            taps = [[wk[kh, kw] for kw in range(3)] for kh in range(3)]  # hoist loads
            tr = _row_chunk(ho, wo)
            ch_sum = jnp.zeros((1, cpad), jnp.float32)
            ch_ssq = jnp.zeros((1, cpad), jnp.float32)
            for r0 in range(0, ho, tr):
                acc = jnp.zeros((tr * wo, cpad), jnp.float32)
                for kh in range(3):
                    for kw in range(3):
                        # rows: contiguous read of 2*tr padded rows, keep every
                        #       other one via a leading-dim split (cheap relabel);
                        # cols: stride-2 window on the sublane dim (lane dim full).
                        v = src[pl.ds(2 * r0 + kh, 2 * tr), pl.ds(kw, wo, 2), :]
                        v = v.reshape(tr, 2, wo, cpad)[:, 0]
                        acc = acc + jnp.dot(v.reshape(tr * wo, cpad), taps[kh][kw],
                                            preferred_element_type=jnp.float32)
                ch_sum = ch_sum + jnp.sum(acc, axis=0, keepdims=True)
                ch_ssq = ch_ssq + jnp.sum(acc * acc, axis=0, keepdims=True)
                dst[pl.ds(1 + r0, tr), pl.ds(1, wo), :] = (
                    acc.reshape(tr, wo, cpad).astype(dt))
            instance_norm_relu(dst, ch_sum, ch_ssq, ho, wo, tr,
                               last=(s == num_down - 1))

    return kernel


def _fused_patch_embed(im2col, weights, n, h, w, cpad, num_down, compute_dtype):
    hf, wf = h >> num_down, w >> num_down
    m1 = (h // 2) * (w // 2)

    in_specs = [pl.BlockSpec((1, m1, K1_PAD), lambda i: (i, 0, 0)),
                pl.BlockSpec((K1_PAD, cpad), lambda i: (0, 0))]
    for _ in range(num_down - 1):
        in_specs.append(pl.BlockSpec((3, 3, cpad, cpad), lambda i: (0, 0, 0, 0)))

    scratch = [pltpu.VMEM((h // (2 ** (s + 1)) + 2, w // (2 ** (s + 1)) + 2, cpad),
                          compute_dtype) for s in range(num_down)]

    return pl.pallas_call(
        _make_kernel(num_down, h, w, cpad),
        out_shape=jax.ShapeDtypeStruct((n, hf, wf, cpad), compute_dtype),
        grid=(n,),
        in_specs=in_specs,
        out_specs=pl.BlockSpec((1, hf, wf, cpad), lambda i: (i, 0, 0, 0)),
        scratch_shapes=scratch,
        compiler_params=pltpu.CompilerParams(
            dimension_semantics=("parallel",),
            vmem_limit_bytes=_vmem_limit_bytes()),
    )(im2col, *weights)


# --------------------------- parameter preparation --------------------------

def prepare_params(w_in, b_in, stages, compute_dtype=jnp.bfloat16):
    """One-time weight relayout: fold 1x1 conv (+bias) into the stage-1 im2col
    weight, drop 3x3 biases (cancelled by InstanceNorm), pad channels to 128."""
    hidden = w_in.shape[0]
    cpad = _round_up(hidden, LANE)

    w1 = jnp.transpose(w_in[:, :, 0, 0], (1, 0))                  # (3, hidden)
    w1aug = jnp.concatenate([w1, b_in[None, :]], axis=0)          # (4, hidden) ones ch = bias
    wk0, _ = stages[0]
    taps0 = jnp.transpose(wk0, (2, 3, 1, 0))                      # (3,3,hidden,hidden)
    w1_full = jnp.einsum('ai,hwio->hwao', w1aug, taps0)           # (3,3,4,hidden)
    w1_mat = w1_full.reshape(K1, hidden)
    w1_mat = jnp.pad(w1_mat, ((0, K1_PAD - K1), (0, cpad - hidden)))
    weights = [w1_mat.astype(compute_dtype)]

    for (wk, _bk) in stages[1:]:
        taps = jnp.transpose(wk, (2, 3, 1, 0))                    # (3,3,in,out)
        taps = jnp.pad(taps, ((0, 0), (0, 0),
                              (0, cpad - hidden), (0, cpad - hidden)))
        weights.append(taps.astype(compute_dtype))
    return weights


def init_params(key, patch_size, hidden_size):
    num_down = int(math.log2(patch_size))
    assert 2 ** num_down == patch_size
    keys = jax.random.split(key, 2 + 2 * num_down)
    w_in = jax.random.normal(keys[0], (hidden_size, 3, 1, 1), jnp.float32) * 0.2
    b_in = jax.random.normal(keys[1], (hidden_size,), jnp.float32) * 0.1
    stages = []
    for i in range(num_down):
        wk = jax.random.normal(keys[2 + 2 * i],
                               (hidden_size, hidden_size, 3, 3), jnp.float32) * 0.05
        bk = jax.random.normal(keys[3 + 2 * i], (hidden_size,), jnp.float32) * 0.1
        stages.append((wk, bk))
    return w_in, b_in, stages


# --------------------------------- forward ----------------------------------

def patch_embedding_forward(images_nchw, weights, hidden):
    compute_dtype = weights[0].dtype
    cpad = weights[0].shape[1]
    num_down = len(weights)
    n, _, h, w = images_nchw.shape
    assert h % (2 ** num_down) == 0 and w % (2 ** num_down) == 0, \
        "spatial dims must be divisible by patch_size"

    # Stage-1 prep (only wrapper-side pass): stride-2 3x3 im2col over
    # [image, ones] so all 9 taps sit on the lane axis; the ones channel carries
    # the folded 1x1-conv bias and is zero in the padding ring (exact borders).
    x = jnp.transpose(images_nchw, (0, 2, 3, 1))                  # NHWC
    x = jnp.concatenate([x, jnp.ones((n, h, w, 1), x.dtype)], axis=-1)
    xp = jnp.pad(x, ((0, 0), (1, 1), (1, 1), (0, 0)))
    ho1, wo1 = h // 2, w // 2
    cols = []
    for kh in range(3):
        for kw in range(3):
            cols.append(lax.slice(xp, (0, kh, kw, 0),
                                  (n, kh + 2 * ho1 - 1, kw + 2 * wo1 - 1, 4),
                                  (1, 2, 2, 1)))
    im2col = jnp.concatenate(cols, axis=-1)                       # (n, ho1, wo1, 36)
    im2col = jnp.pad(im2col, ((0, 0), (0, 0), (0, 0), (0, K1_PAD - K1)))
    im2col = im2col.reshape(n, ho1 * wo1, K1_PAD).astype(compute_dtype)

    out = _fused_patch_embed(im2col, list(weights), n, h, w, cpad, num_down,
                             compute_dtype)
    out = out[..., :hidden]                                       # drop lane padding
    return jnp.transpose(out, (0, 3, 1, 2)).astype(jnp.float32)   # NCHW


# ----------------------------- pure-JAX reference ---------------------------

def ref_forward(images_nchw, w_in, b_in, stages):
    x = jnp.transpose(images_nchw, (0, 2, 3, 1))
    y = jnp.einsum('nhwc,oc->nhwo', x, w_in[:, :, 0, 0]) + b_in
    for (wk, bk) in stages:
        w_hwio = jnp.transpose(wk, (2, 3, 1, 0))
        y = lax.conv_general_dilated(
            y, w_hwio, (2, 2), ((1, 1), (1, 1)),
            dimension_numbers=('NHWC', 'HWIO', 'NHWC')) + bk
        mean = y.mean(axis=(1, 2), keepdims=True)
        var = jnp.mean(jnp.square(y - mean), axis=(1, 2), keepdims=True)
        y = (y - mean) * lax.rsqrt(var + EPS)
        y = jnp.maximum(y, 0.0)
    return jnp.transpose(y, (0, 3, 1, 2))


if __name__ == "__main__":
    key = jax.random.PRNGKey(0)
    k_img, k_par = jax.random.split(key)
    patch_size, hidden = 4, 32
    images = jax.random.normal(k_img, (2, 3, 16, 16), jnp.float32)   # NCHW
    w_in, b_in, stages = init_params(k_par, patch_size, hidden)

    fwd = jax.jit(patch_embedding_forward, static_argnums=(2,))
    ref = ref_forward(images, w_in, b_in, stages)

    # 1) Algorithmic exactness: f32 operands/buffers, tight tolerance.
    packed_f32 = prepare_params(w_in, b_in, stages, compute_dtype=jnp.float32)
    out_f32 = jax.block_until_ready(fwd(images, packed_f32, hidden))
    assert out_f32.shape == (2, hidden, 16 // patch_size, 16 // patch_size), out_f32.shape
    err_f32 = float(jnp.max(jnp.abs(out_f32 - ref)))
    if err_f32 > 2e-3:
        raise AssertionError(f"Pallas (f32) vs reference mismatch: max abs err {err_f32}")

    # 2) Performance config: bf16 operands/buffers, f32 accumulate/norm.
    packed_bf16 = prepare_params(w_in, b_in, stages, compute_dtype=jnp.bfloat16)
    out_bf16 = jax.block_until_ready(fwd(images, packed_bf16, hidden))
    err_bf16 = float(jnp.max(jnp.abs(out_bf16 - ref)))
    if err_bf16 > 1e-1:
        raise AssertionError(f"Pallas (bf16) vs reference mismatch: max abs err {err_bf16}")

    print("KERNEL_OK")
</pallas_src>

<mosaic_0001>
module attributes {stable_mosaic.version = 11 : i64} {
  func.func @kernel(%arg0: i32, %arg1: memref<1x64x40xf32, #tpu.memory_space<vmem>>, %arg2: memref<40x128xf32, #tpu.memory_space<vmem>>, %arg3: memref<3x3x128x128xf32, #tpu.memory_space<vmem>>, %arg4: memref<1x4x4x128xf32, #tpu.memory_space<vmem>>, %arg5: memref<10x10x128xf32, #tpu.memory_space<vmem>>, %arg6: memref<6x6x128xf32, #tpu.memory_space<vmem>>) attributes {dimension_semantics = [#tpu.dimension_semantics<parallel>], iteration_bounds = array<i64: 2>, scalar_prefetch = 0 : i64, scratch_operands = 2 : i64, tpu.core_type = #tpu.core_type<tc>, window_params = [{transform_indices = @transform_0, window_bounds = array<i64: 1, 64, 40>}, {pipeline_mode = #tpu.pipeline_mode<synchronous>, transform_indices = @transform_1, window_bounds = array<i64: 40, 128>}, {pipeline_mode = #tpu.pipeline_mode<synchronous>, transform_indices = @transform_2, window_bounds = array<i64: 3, 3, 128, 128>}, {transform_indices = @transform_3, window_bounds = array<i64: 1, 4, 4, 128>}]} {
    %cst = arith.constant 0.000000e+00 : f32
    %0 = vector.broadcast %cst : f32 to vector<1x10x128xf32>
    %c0 = arith.constant 0 : index
    %c0_0 = arith.constant 0 : index
    %c0_1 = arith.constant 0 : index
    %1 = vector.load %arg5[%c0, %c0_0, %c0_1] : memref<10x10x128xf32, #tpu.memory_space<vmem>>, vector<1x10x128xf32>
    tpu.vector_store %arg5[%c0, %c0_0, %c0_1], %0 {strides = array<i32>} : memref<10x10x128xf32, #tpu.memory_space<vmem>>, vector<1x10x128xf32>,
    %c9 = arith.constant 9 : index
    %c0_2 = arith.constant 0 : index
    %c0_3 = arith.constant 0 : index
    %2 = vector.load %arg5[%c9, %c0_2, %c0_3] : memref<10x10x128xf32, #tpu.memory_space<vmem>>, vector<1x10x128xf32>
    tpu.vector_store %arg5[%c9, %c0_2, %c0_3], %0 {strides = array<i32>} : memref<10x10x128xf32, #tpu.memory_space<vmem>>, vector<1x10x128xf32>,
    %cst_4 = arith.constant 0.000000e+00 : f32
    %3 = vector.broadcast %cst_4 : f32 to vector<10x1x128xf32>
    %c0_5 = arith.constant 0 : index
    %c0_6 = arith.constant 0 : index
    %c0_7 = arith.constant 0 : index
    %4 = vector.load %arg5[%c0_5, %c0_6, %c0_7] : memref<10x10x128xf32, #tpu.memory_space<vmem>>, vector<10x1x128xf32>
    tpu.vector_store %arg5[%c0_5, %c0_6, %c0_7], %3 {strides = array<i32>} : memref<10x10x128xf32, #tpu.memory_space<vmem>>, vector<10x1x128xf32>,
    %c0_8 = arith.constant 0 : index
    %c9_9 = arith.constant 9 : index
    %c0_10 = arith.constant 0 : index
    %5 = vector.load %arg5[%c0_8, %c9_9, %c0_10] : memref<10x10x128xf32, #tpu.memory_space<vmem>>, vector<10x1x128xf32>
    tpu.vector_store %arg5[%c0_8, %c9_9, %c0_10], %3 {strides = array<i32>} : memref<10x10x128xf32, #tpu.memory_space<vmem>>, vector<10x1x128xf32>,
    %cst_11 = arith.constant 0.000000e+00 : f32
    %6 = vector.broadcast %cst_11 : f32 to vector<1x6x128xf32>
    %c0_12 = arith.constant 0 : index
    %c0_13 = arith.constant 0 : index
    %c0_14 = arith.constant 0 : index
    %7 = vector.load %arg6[%c0_12, %c0_13, %c0_14] : memref<6x6x128xf32, #tpu.memory_space<vmem>>, vector<1x6x128xf32>
    tpu.vector_store %arg6[%c0_12, %c0_13, %c0_14], %6 {strides = array<i32>} : memref<6x6x128xf32, #tpu.memory_space<vmem>>, vector<1x6x128xf32>,
    %c5 = arith.constant 5 : index
    %c0_15 = arith.constant 0 : index
    %c0_16 = arith.constant 0 : index
    %8 = vector.load %arg6[%c5, %c0_15, %c0_16] : memref<6x6x128xf32, #tpu.memory_space<vmem>>, vector<1x6x128xf32>
    tpu.vector_store %arg6[%c5, %c0_15, %c0_16], %6 {strides = array<i32>} : memref<6x6x128xf32, #tpu.memory_space<vmem>>, vector<1x6x128xf32>,
    %cst_17 = arith.constant 0.000000e+00 : f32
    %9 = vector.broadcast %cst_17 : f32 to vector<6x1x128xf32>
    %c0_18 = arith.constant 0 : index
    %c0_19 = arith.constant 0 : index
    %c0_20 = arith.constant 0 : index
    %10 = vector.load %arg6[%c0_18, %c0_19, %c0_20] : memref<6x6x128xf32, #tpu.memory_space<vmem>>, vector<6x1x128xf32>
    tpu.vector_store %arg6[%c0_18, %c0_19, %c0_20], %9 {strides = array<i32>} : memref<6x6x128xf32, #tpu.memory_space<vmem>>, vector<6x1x128xf32>,
    %c0_21 = arith.constant 0 : index
    %c5_22 = arith.constant 5 : index
    %c0_23 = arith.constant 0 : index
    %11 = vector.load %arg6[%c0_21, %c5_22, %c0_23] : memref<6x6x128xf32, #tpu.memory_space<vmem>>, vector<6x1x128xf32>
    tpu.vector_store %arg6[%c0_21, %c5_22, %c0_23], %9 {strides = array<i32>} : memref<6x6x128xf32, #tpu.memory_space<vmem>>, vector<6x1x128xf32>,
    %c0_24 = arith.constant 0 : index
    %c0_25 = arith.constant 0 : index
    %12 = vector.load %arg2[%c0_24, %c0_25] : memref<40x128xf32, #tpu.memory_space<vmem>>, vector<40x128xf32>
    %cst_26 = arith.constant 0.000000e+00 : f32
    %13 = vector.broadcast %cst_26 : f32 to vector<1x128xf32>
    %cst_27 = arith.constant 0.000000e+00 : f32
    %14 = vector.broadcast %cst_27 : f32 to vector<1x128xf32>
    %c0_28 = arith.constant 0 : index
    %c0_29 = arith.constant 0 : index
    %c0_30 = arith.constant 0 : index
    %15 = vector.load %arg1[%c0_28, %c0_29, %c0_30] : memref<1x64x40xf32, #tpu.memory_space<vmem>>, vector<1x64x40xf32>
    %16 = vector.shape_cast %15 : vector<1x64x40xf32> to vector<64x40xf32>
    %cst_31 = arith.constant dense<0.000000e+00> : vector<64x128xf32>
    %17 = tpu.matmul %16, %12, %cst_31 {dimension_numbers = #tpu.dot_dimension_numbers<[1], [0], [0], [1], [0, 0, 1, 1], [], []>} : vector<64x40xf32>, vector<40x128xf32>, vector<64x128xf32> -> vector<64x128xf32>
    %cst_32 = arith.constant dense<0.000000e+00> : vector<128xf32>
    %18 = vector.multi_reduction <add>, %17, %cst_32 [0] : vector<64x128xf32> to vector<128xf32>
    %19 = vector.shape_cast %18 : vector<128xf32> to vector<1x128xf32>
    %20 = arith.addf %13, %19 : vector<1x128xf32>
    %21 = arith.mulf %17, %17 : vector<64x128xf32>
    %cst_33 = arith.constant dense<0.000000e+00> : vector<128xf32>
    %22 = vector.multi_reduction <add>, %21, %cst_33 [0] : vector<64x128xf32> to vector<128xf32>
    %23 = vector.shape_cast %22 : vector<128xf32> to vector<1x128xf32>
    %24 = arith.addf %14, %23 : vector<1x128xf32>
    %25 = vector.shape_cast %17 : vector<64x128xf32> to vector<8x8x128xf32>
    %c1 = arith.constant 1 : index
    %c1_34 = arith.constant 1 : index
    %c0_35 = arith.constant 0 : index
    %26 = vector.load %arg5[%c1, %c1_34, %c0_35] : memref<10x10x128xf32, #tpu.memory_space<vmem>>, vector<8x8x128xf32>
    tpu.vector_store %arg5[%c1, %c1_34, %c0_35], %25 {strides = array<i32>} : memref<10x10x128xf32, #tpu.memory_space<vmem>>, vector<8x8x128xf32>,
    %cst_36 = arith.constant 1.562500e-02 : f32
    %27 = vector.broadcast %cst_36 : f32 to vector<1x128xf32>
    %28 = arith.mulf %20, %27 : vector<1x128xf32>
    %cst_37 = arith.constant 1.562500e-02 : f32
    %29 = vector.broadcast %cst_37 : f32 to vector<1x128xf32>
    %30 = arith.mulf %24, %29 : vector<1x128xf32>
    %31 = arith.mulf %28, %28 : vector<1x128xf32>
    %32 = arith.subf %30, %31 : vector<1x128xf32>
    %cst_38 = arith.constant 0.000000e+00 : f32
    %33 = vector.broadcast %cst_38 : f32 to vector<1x128xf32>
    %34 = arith.maximumf %32, %33 : vector<1x128xf32>
    %cst_39 = arith.constant 9.99999974E-6 : f32
    %35 = vector.broadcast %cst_39 : f32 to vector<1x128xf32>
    %36 = arith.addf %34, %35 : vector<1x128xf32>
    %37 = math.rsqrt %36 : vector<1x128xf32>
    %38 = vector.shape_cast %28 : vector<1x128xf32> to vector<1x1x128xf32>
    %39 = vector.shape_cast %37 : vector<1x128xf32> to vector<1x1x128xf32>
    %c1_40 = arith.constant 1 : index
    %c1_41 = arith.constant 1 : index
    %c0_42 = arith.constant 0 : index
    %40 = vector.load %arg5[%c1_40, %c1_41, %c0_42] : memref<10x10x128xf32, #tpu.memory_space<vmem>>, vector<8x8x128xf32>
    %41 = vector.broadcast %38 : vector<1x1x128xf32> to vector<8x8x128xf32>
    %42 = arith.subf %40, %41 : vector<8x8x128xf32>
    %43 = vector.broadcast %39 : vector<1x1x128xf32> to vector<8x8x128xf32>
    %44 = arith.mulf %42, %43 : vector<8x8x128xf32>
    %cst_43 = arith.constant 0.000000e+00 : f32
    %45 = vector.broadcast %cst_43 : f32 to vector<8x8x128xf32>
    %46 = arith.maximumf %44, %45 : vector<8x8x128xf32>
    %c1_44 = arith.constant 1 : index
    %c1_45 = arith.constant 1 : index
    %c0_46 = arith.constant 0 : index
    %47 = vector.load %arg5[%c1_44, %c1_45, %c0_46] : memref<10x10x128xf32, #tpu.memory_space<vmem>>, vector<8x8x128xf32>
    tpu.vector_store %arg5[%c1_44, %c1_45, %c0_46], %46 {strides = array<i32>} : memref<10x10x128xf32, #tpu.memory_space<vmem>>, vector<8x8x128xf32>,
    %c0_47 = arith.constant 0 : index
    %c0_48 = arith.constant 0 : index
    %c0_49 = arith.constant 0 : index
    %c0_50 = arith.constant 0 : index
    %48 = vector.load %arg3[%c0_47, %c0_48, %c0_49, %c0_50] : memref<3x3x128x128xf32, #tpu.memory_space<vmem>>, vector<1x1x128x128xf32>
    %49 = vector.shape_cast %48 : vector<1x1x128x128xf32> to vector<128x128xf32>
    %c0_51 = arith.constant 0 : index
    %c1_52 = arith.constant 1 : index
    %c0_53 = arith.constant 0 : index
    %c0_54 = arith.constant 0 : index
    %50 = vector.load %arg3[%c0_51, %c1_52, %c0_53, %c0_54] : memref<3x3x128x128xf32, #tpu.memory_space<vmem>>, vector<1x1x128x128xf32>
    %51 = vector.shape_cast %50 : vector<1x1x128x128xf32> to vector<128x128xf32>
    %c0_55 = arith.constant 0 : index
    %c2 = arith.constant 2 : index
    %c0_56 = arith.constant 0 : index
    %c0_57 = arith.constant 0 : index
    %52 = vector.load %arg3[%c0_55, %c2, %c0_56, %c0_57] : memref<3x3x128x128xf32, #tpu.memory_space<vmem>>, vector<1x1x128x128xf32>
    %53 = vector.shape_cast %52 : vector<1x1x128x128xf32> to vector<128x128xf32>
    %c1_58 = arith.constant 1 : index
    %c0_59 = arith.constant 0 : index
    %c0_60 = arith.constant 0 : index
    %c0_61 = arith.constant 0 : index
    %54 = vector.load %arg3[%c1_58, %c0_59, %c0_60, %c0_61] : memref<3x3x128x128xf32, #tpu.memory_space<vmem>>, vector<1x1x128x128xf32>
    %55 = vector.shape_cast %54 : vector<1x1x128x128xf32> to vector<128x128xf32>
    %c1_62 = arith.constant 1 : index
    %c1_63 = arith.constant 1 : index
    %c0_64 = arith.constant 0 : index
    %c0_65 = arith.constant 0 : index
    %56 = vector.load %arg3[%c1_62, %c1_63, %c0_64, %c0_65] : memref<3x3x128x128xf32, #tpu.memory_space<vmem>>, vector<1x1x128x128xf32>
    %57 = vector.shape_cast %56 : vector<1x1x128x128xf32> to vector<128x128xf32>
    %c1_66 = arith.constant 1 : index
    %c2_67 = arith.constant 2 : index
    %c0_68 = arith.constant 0 : index
    %c0_69 = arith.constant 0 : index
    %58 = vector.load %arg3[%c1_66, %c2_67, %c0_68, %c0_69] : memref<3x3x128x128xf32, #tpu.memory_space<vmem>>, vector<1x1x128x128xf32>
    %59 = vector.shape_cast %58 : vector<1x1x128x128xf32> to vector<128x128xf32>
    %c2_70 = arith.constant 2 : index
    %c0_71 = arith.constant 0 : index
    %c0_72 = arith.constant 0 : index
    %c0_73 = arith.constant 0 : index
    %60 = vector.load %arg3[%c2_70, %c0_71, %c0_72, %c0_73] : memref<3x3x128x128xf32, #tpu.memory_space<vmem>>, vector<1x1x128x128xf32>
    %61 = vector.shape_cast %60 : vector<1x1x128x128xf32> to vector<128x128xf32>
    %c2_74 = arith.constant 2 : index
    %c1_75 = arith.constant 1 : index
    %c0_76 = arith.constant 0 : index
    %c0_77 = arith.constant 0 : index
    %62 = vector.load %arg3[%c2_74, %c1_75, %c0_76, %c0_77] : memref<3x3x128x128xf32, #tpu.memory_space<vmem>>, vector<1x1x128x128xf32>
    %63 = vector.shape_cast %62 : vector<1x1x128x128xf32> to vector<128x128xf32>
    %c2_78 = arith.constant 2 : index
    %c2_79 = arith.constant 2 : index
    %c0_80 = arith.constant 0 : index
    %c0_81 = arith.constant 0 : index
    %64 = vector.load %arg3[%c2_78, %c2_79, %c0_80, %c0_81] : memref<3x3x128x128xf32, #tpu.memory_space<vmem>>, vector<1x1x128x128xf32>
    %65 = vector.shape_cast %64 : vector<1x1x128x128xf32> to vector<128x128xf32>
    %cst_82 = arith.constant 0.000000e+00 : f32
    %66 = vector.broadcast %cst_82 : f32 to vector<1x128xf32>
    %cst_83 = arith.constant 0.000000e+00 : f32
    %67 = vector.broadcast %cst_83 : f32 to vector<1x128xf32>
    %cst_84 = arith.constant 0.000000e+00 : f32
    %68 = vector.broadcast %cst_84 : f32 to vector<16x128xf32>
    %c0_85 = arith.constant 0 : index
    %c0_86 = arith.constant 0 : index
    %c0_87 = arith.constant 0 : index
    %69 = tpu.strided_load %arg5[%c0_85, %c0_86, %c0_87] {strides = array<i32: 1, 2, 1>} : memref<10x10x128xf32, #tpu.memory_space<vmem>>, vector<8x4x128xf32>
    %70 = vector.shape_cast %69 : vector<8x4x128xf32> to vector<4x2x4x128xf32>
    %71 = vector.extract_strided_slice %70 {offsets = [0, 0, 0, 0], sizes = [4, 1, 4, 128], strides = [1, 1, 1, 1]} : vector<4x2x4x128xf32> to vector<4x1x4x128xf32>
    %72 = vector.shape_cast %71 : vector<4x1x4x128xf32> to vector<4x4x128xf32>
    %73 = vector.shape_cast %72 : vector<4x4x128xf32> to vector<16x128xf32>
    %cst_88 = arith.constant dense<0.000000e+00> : vector<16x128xf32>
    %74 = tpu.matmul %73, %49, %cst_88 {dimension_numbers = #tpu.dot_dimension_numbers<[1], [0], [0], [1], [0, 0, 1, 1], [], []>} : vector<16x128xf32>, vector<128x128xf32>, vector<16x128xf32> -> vector<16x128xf32>
    %75 = arith.addf %68, %74 : vector<16x128xf32>
    %c0_89 = arith.constant 0 : index
    %c1_90 = arith.constant 1 : index
    %c0_91 = arith.constant 0 : index
    %76 = tpu.strided_load %arg5[%c0_89, %c1_90, %c0_91] {strides = array<i32: 1, 2, 1>} : memref<10x10x128xf32, #tpu.memory_space<vmem>>, vector<8x4x128xf32>
    %77 = vector.shape_cast %76 : vector<8x4x128xf32> to vector<4x2x4x128xf32>
    %78 = vector.extract_strided_slice %77 {offsets = [0, 0, 0, 0], sizes = [4, 1, 4, 128], strides = [1, 1, 1, 1]} : vector<4x2x4x128xf32> to vector<4x1x4x128xf32>
    %79 = vector.shape_cast %78 : vector<4x1x4x128xf32> to vector<4x4x128xf32>
    %80 = vector.shape_cast %79 : vector<4x4x128xf32> to vector<16x128xf32>
    %cst_92 = arith.constant dense<0.000000e+00> : vector<16x128xf32>
    %81 = tpu.matmul %80, %51, %cst_92 {dimension_numbers = #tpu.dot_dimension_numbers<[1], [0], [0], [1], [0, 0, 1, 1], [], []>} : vector<16x128xf32>, vector<128x128xf32>, vector<16x128xf32> -> vector<16x128xf32>
    %82 = arith.addf %75, %81 : vector<16x128xf32>
    %c0_93 = arith.constant 0 : index
    %c2_94 = arith.constant 2 : index
    %c0_95 = arith.constant 0 : index
    %83 = tpu.strided_load %arg5[%c0_93, %c2_94, %c0_95] {strides = array<i32: 1, 2, 1>} : memref<10x10x128xf32, #tpu.memory_space<vmem>>, vector<8x4x128xf32>
    %84 = vector.shape_cast %83 : vector<8x4x128xf32> to vector<4x2x4x128xf32>
    %85 = vector.extract_strided_slice %84 {offsets = [0, 0, 0, 0], sizes = [4, 1, 4, 128], strides = [1, 1, 1, 1]} : vector<4x2x4x128xf32> to vector<4x1x4x128xf32>
    %86 = vector.shape_cast %85 : vector<4x1x4x128xf32> to vector<4x4x128xf32>
    %87 = vector.shape_cast %86 : vector<4x4x128xf32> to vector<16x128xf32>
    %cst_96 = arith.constant dense<0.000000e+00> : vector<16x128xf32>
    %88 = tpu.matmul %87, %53, %cst_96 {dimension_numbers = #tpu.dot_dimension_numbers<[1], [0], [0], [1], [0, 0, 1, 1], [], []>} : vector<16x128xf32>, vector<128x128xf32>, vector<16x128xf32> -> vector<16x128xf32>
    %89 = arith.addf %82, %88 : vector<16x128xf32>
    %c1_97 = arith.constant 1 : index
    %c0_98 = arith.constant 0 : index
    %c0_99 = arith.constant 0 : index
    %90 = tpu.strided_load %arg5[%c1_97, %c0_98, %c0_99] {strides = array<i32: 1, 2, 1>} : memref<10x10x128xf32, #tpu.memory_space<vmem>>, vector<8x4x128xf32>
    %91 = vector.shape_cast %90 : vector<8x4x128xf32> to vector<4x2x4x128xf32>
    %92 = vector.extract_strided_slice %91 {offsets = [0, 0, 0, 0], sizes = [4, 1, 4, 128], strides = [1, 1, 1, 1]} : vector<4x2x4x128xf32> to vector<4x1x4x128xf32>
    %93 = vector.shape_cast %92 : vector<4x1x4x128xf32> to vector<4x4x128xf32>
    %94 = vector.shape_cast %93 : vector<4x4x128xf32> to vector<16x128xf32>
    %cst_100 = arith.constant dense<0.000000e+00> : vector<16x128xf32>
    %95 = tpu.matmul %94, %55, %cst_100 {dimension_numbers = #tpu.dot_dimension_numbers<[1], [0], [0], [1], [0, 0, 1, 1], [], []>} : vector<16x128xf32>, vector<128x128xf32>, vector<16x128xf32> -> vector<16x128xf32>
    %96 = arith.addf %89, %95 : vector<16x128xf32>
    %c1_101 = arith.constant 1 : index
    %c1_102 = arith.constant 1 : index
    %c0_103 = arith.constant 0 : index
    %97 = tpu.strided_load %arg5[%c1_101, %c1_102, %c0_103] {strides = array<i32: 1, 2, 1>} : memref<10x10x128xf32, #tpu.memory_space<vmem>>, vector<8x4x128xf32>
    %98 = vector.shape_cast %97 : vector<8x4x128xf32> to vector<4x2x4x128xf32>
    %99 = vector.extract_strided_slice %98 {offsets = [0, 0, 0, 0], sizes = [4, 1, 4, 128], strides = [1, 1, 1, 1]} : vector<4x2x4x128xf32> to vector<4x1x4x128xf32>
    %100 = vector.shape_cast %99 : vector<4x1x4x128xf32> to vector<4x4x128xf32>
    %101 = vector.shape_cast %100 : vector<4x4x128xf32> to vector<16x128xf32>
    %cst_104 = arith.constant dense<0.000000e+00> : vector<16x128xf32>
    %102 = tpu.matmul %101, %57, %cst_104 {dimension_numbers = #tpu.dot_dimension_numbers<[1], [0], [0], [1], [0, 0, 1, 1], [], []>} : vector<16x128xf32>, vector<128x128xf32>, vector<16x128xf32> -> vector<16x128xf32>
    %103 = arith.addf %96, %102 : vector<16x128xf32>
    %c1_105 = arith.constant 1 : index
    %c2_106 = arith.constant 2 : index
    %c0_107 = arith.constant 0 : index
    %104 = tpu.strided_load %arg5[%c1_105, %c2_106, %c0_107] {strides = array<i32: 1, 2, 1>} : memref<10x10x128xf32, #tpu.memory_space<vmem>>, vector<8x4x128xf32>
    %105 = vector.shape_cast %104 : vector<8x4x128xf32> to vector<4x2x4x128xf32>
    %106 = vector.extract_strided_slice %105 {offsets = [0, 0, 0, 0], sizes = [4, 1, 4, 128], strides = [1, 1, 1, 1]} : vector<4x2x4x128xf32> to vector<4x1x4x128xf32>
    %107 = vector.shape_cast %106 : vector<4x1x4x128xf32> to vector<4x4x128xf32>
    %108 = vector.shape_cast %107 : vector<4x4x128xf32> to vector<16x128xf32>
    %cst_108 = arith.constant dense<0.000000e+00> : vector<16x128xf32>
    %109 = tpu.matmul %108, %59, %cst_108 {dimension_numbers = #tpu.dot_dimension_numbers<[1], [0], [0], [1], [0, 0, 1, 1], [], []>} : vector<16x128xf32>, vector<128x128xf32>, vector<16x128xf32> -> vector<16x128xf32>
    %110 = arith.addf %103, %109 : vector<16x128xf32>
    %c2_109 = arith.constant 2 : index
    %c0_110 = arith.constant 0 : index
    %c0_111 = arith.constant 0 : index
    %111 = tpu.strided_load %arg5[%c2_109, %c0_110, %c0_111] {strides = array<i32: 1, 2, 1>} : memref<10x10x128xf32, #tpu.memory_space<vmem>>, vector<8x4x128xf32>
    %112 = vector.shape_cast %111 : vector<8x4x128xf32> to vector<4x2x4x128xf32>
    %113 = vector.extract_strided_slice %112 {offsets = [0, 0, 0, 0], sizes = [4, 1, 4, 128], strides = [1, 1, 1, 1]} : vector<4x2x4x128xf32> to vector<4x1x4x128xf32>
    %114 = vector.shape_cast %113 : vector<4x1x4x128xf32> to vector<4x4x128xf32>
    %115 = vector.shape_cast %114 : vector<4x4x128xf32> to vector<16x128xf32>
    %cst_112 = arith.constant dense<0.000000e+00> : vector<16x128xf32>
    %116 = tpu.matmul %115, %61, %cst_112 {dimension_numbers = #tpu.dot_dimension_numbers<[1], [0], [0], [1], [0, 0, 1, 1], [], []>} : vector<16x128xf32>, vector<128x128xf32>, vector<16x128xf32> -> vector<16x128xf32>
    %117 = arith.addf %110, %116 : vector<16x128xf32>
    %c2_113 = arith.constant 2 : index
    %c1_114 = arith.constant 1 : index
    %c0_115 = arith.constant 0 : index
    %118 = tpu.strided_load %arg5[%c2_113, %c1_114, %c0_115] {strides = array<i32: 1, 2, 1>} : memref<10x10x128xf32, #tpu.memory_space<vmem>>, vector<8x4x128xf32>
    %119 = vector.shape_cast %118 : vector<8x4x128xf32> to vector<4x2x4x128xf32>
    %120 = vector.extract_strided_slice %119 {offsets = [0, 0, 0, 0], sizes = [4, 1, 4, 128], strides = [1, 1, 1, 1]} : vector<4x2x4x128xf32> to vector<4x1x4x128xf32>
    %121 = vector.shape_cast %120 : vector<4x1x4x128xf32> to vector<4x4x128xf32>
    %122 = vector.shape_cast %121 : vector<4x4x128xf32> to vector<16x128xf32>
    %cst_116 = arith.constant dense<0.000000e+00> : vector<16x128xf32>
    %123 = tpu.matmul %122, %63, %cst_116 {dimension_numbers = #tpu.dot_dimension_numbers<[1], [0], [0], [1], [0, 0, 1, 1], [], []>} : vector<16x128xf32>, vector<128x128xf32>, vector<16x128xf32> -> vector<16x128xf32>
    %124 = arith.addf %117, %123 : vector<16x128xf32>
    %c2_117 = arith.constant 2 : index
    %c2_118 = arith.constant 2 : index
    %c0_119 = arith.constant 0 : index
    %125 = tpu.strided_load %arg5[%c2_117, %c2_118, %c0_119] {strides = array<i32: 1, 2, 1>} : memref<10x10x128xf32, #tpu.memory_space<vmem>>, vector<8x4x128xf32>
    %126 = vector.shape_cast %125 : vector<8x4x128xf32> to vector<4x2x4x128xf32>
    %127 = vector.extract_strided_slice %126 {offsets = [0, 0, 0, 0], sizes = [4, 1, 4, 128], strides = [1, 1, 1, 1]} : vector<4x2x4x128xf32> to vector<4x1x4x128xf32>
    %128 = vector.shape_cast %127 : vector<4x1x4x128xf32> to vector<4x4x128xf32>
    %129 = vector.shape_cast %128 : vector<4x4x128xf32> to vector<16x128xf32>
    %cst_120 = arith.constant dense<0.000000e+00> : vector<16x128xf32>
    %130 = tpu.matmul %129, %65, %cst_120 {dimension_numbers = #tpu.dot_dimension_numbers<[1], [0], [0], [1], [0, 0, 1, 1], [], []>} : vector<16x128xf32>, vector<128x128xf32>, vector<16x128xf32> -> vector<16x128xf32>
    %131 = arith.addf %124, %130 : vector<16x128xf32>
    %cst_121 = arith.constant dense<0.000000e+00> : vector<128xf32>
    %132 = vector.multi_reduction <add>, %131, %cst_121 [0] : vector<16x128xf32> to vector<128xf32>
    %133 = vector.shape_cast %132 : vector<128xf32> to vector<1x128xf32>
    %134 = arith.addf %66, %133 : vector<1x128xf32>
    %135 = arith.mulf %131, %131 : vector<16x128xf32>
    %cst_122 = arith.constant dense<0.000000e+00> : vector<128xf32>
    %136 = vector.multi_reduction <add>, %135, %cst_122 [0] : vector<16x128xf32> to vector<128xf32>
    %137 = vector.shape_cast %136 : vector<128xf32> to vector<1x128xf32>
    %138 = arith.addf %67, %137 : vector<1x128xf32>
    %139 = vector.shape_cast %131 : vector<16x128xf32> to vector<4x4x128xf32>
    %c1_123 = arith.constant 1 : index
    %c1_124 = arith.constant 1 : index
    %c0_125 = arith.constant 0 : index
    %140 = vector.load %arg6[%c1_123, %c1_124, %c0_125] : memref<6x6x128xf32, #tpu.memory_space<vmem>>, vector<4x4x128xf32>
    tpu.vector_store %arg6[%c1_123, %c1_124, %c0_125], %139 {strides = array<i32>} : memref<6x6x128xf32, #tpu.memory_space<vmem>>, vector<4x4x128xf32>,
    %cst_126 = arith.constant 6.250000e-02 : f32
    %141 = vector.broadcast %cst_126 : f32 to vector<1x128xf32>
    %142 = arith.mulf %134, %141 : vector<1x128xf32>
    %cst_127 = arith.constant 6.250000e-02 : f32
    %143 = vector.broadcast %cst_127 : f32 to vector<1x128xf32>
    %144 = arith.mulf %138, %143 : vector<1x128xf32>
    %145 = arith.mulf %142, %142 : vector<1x128xf32>
    %146 = arith.subf %144, %145 : vector<1x128xf32>
    %cst_128 = arith.constant 0.000000e+00 : f32
    %147 = vector.broadcast %cst_128 : f32 to vector<1x128xf32>
    %148 = arith.maximumf %146, %147 : vector<1x128xf32>
    %cst_129 = arith.constant 9.99999974E-6 : f32
    %149 = vector.broadcast %cst_129 : f32 to vector<1x128xf32>
    %150 = arith.addf %148, %149 : vector<1x128xf32>
    %151 = math.rsqrt %150 : vector<1x128xf32>
    %152 = vector.shape_cast %142 : vector<1x128xf32> to vector<1x1x128xf32>
    %153 = vector.shape_cast %151 : vector<1x128xf32> to vector<1x1x128xf32>
    %c1_130 = arith.constant 1 : index
    %c1_131 = arith.constant 1 : index
    %c0_132 = arith.constant 0 : index
    %154 = vector.load %arg6[%c1_130, %c1_131, %c0_132] : memref<6x6x128xf32, #tpu.memory_space<vmem>>, vector<4x4x128xf32>
    %155 = vector.broadcast %152 : vector<1x1x128xf32> to vector<4x4x128xf32>
    %156 = arith.subf %154, %155 : vector<4x4x128xf32>
    %157 = vector.broadcast %153 : vector<1x1x128xf32> to vector<4x4x128xf32>
    %158 = arith.mulf %156, %157 : vector<4x4x128xf32>
    %cst_133 = arith.constant 0.000000e+00 : f32
    %159 = vector.broadcast %cst_133 : f32 to vector<4x4x128xf32>
    %160 = arith.maximumf %158, %159 : vector<4x4x128xf32>
    %c0_134 = arith.constant 0 : index
    %c0_135 = arith.constant 0 : index
    %c0_136 = arith.constant 0 : index
    %c0_137 = arith.constant 0 : index
    %161 = vector.load %arg4[%c0_134, %c0_135, %c0_136, %c0_137] : memref<1x4x4x128xf32, #tpu.memory_space<vmem>>, vector<1x4x4x128xf32>
    %162 = vector.shape_cast %161 : vector<1x4x4x128xf32> to vector<4x4x128xf32>
    %163 = vector.shape_cast %160 : vector<4x4x128xf32> to vector<1x4x4x128xf32>
    tpu.vector_store %arg4[%c0_134, %c0_135, %c0_136, %c0_137], %163 {strides = array<i32>} : memref<1x4x4x128xf32, #tpu.memory_space<vmem>>, vector<1x4x4x128xf32>,
    return
  }
  func.func @transform_0(%arg0: i32) -> (i32, i32, i32) {
    %c0_i32 = arith.constant 0 : i32
    %c0_i32_0 = arith.constant 0 : i32
    %c0_i32_1 = arith.constant 0 : i32
    return %arg0, %c0_i32, %c0_i32_0 : i32, i32, i32
  }
  func.func @transform_1(%arg0: i32) -> (i32, i32) {
    %c0_i32 = arith.constant 0 : i32
    %c0_i32_0 = arith.constant 0 : i32
    %c0_i32_1 = arith.constant 0 : i32
    return %c0_i32, %c0_i32_0 : i32, i32
  }
  func.func @transform_2(%arg0: i32) -> (i32, i32, i32, i32) {
    %c0_i32 = arith.constant 0 : i32
    %c0_i32_0 = arith.constant 0 : i32
    %c0_i32_1 = arith.constant 0 : i32
    %c0_i32_2 = arith.constant 0 : i32
    %c0_i32_3 = arith.constant 0 : i32
    return %c0_i32, %c0_i32_0, %c0_i32_1, %c0_i32_2 : i32, i32, i32, i32
  }
  func.func @transform_3(%arg0: i32) -> (i32, i32, i32, i32) {
    %c0_i32 = arith.constant 0 : i32
    %c0_i32_0 = arith.constant 0 : i32
    %c0_i32_1 = arith.constant 0 : i32
    %c0_i32_2 = arith.constant 0 : i32
    return %arg0, %c0_i32, %c0_i32_0, %c0_i32_1 : i32, i32, i32, i32
  }
}

</mosaic_0001>

<llo_original>
// kernel: patch_embedding_forward.1
$region0: #{patch_embedding_forward.1}
  #allocation0 [shape = 'u32[]', space=smem, size = 0x4, offset = 0x4, fixed_abs, tag = 'smem constant byte address 0x4 - core index']
  #allocation1 [shape = 'u32[144,128]{1,0:T(1,128)}', space=vmem, size = 0x12000, scoped, tag = 'internal scratch']
  #allocation2 [shape = 'f32[10,10,128]{2,1,0:T(8,128)}', space=vmem, size = 0x14000, scoped, tag = 'scratch operand']
  #allocation3 [shape = 'f32[6,6,128]{2,1,0:T(8,128)}', space=vmem, size = 0x6000, scoped, tag = 'scratch operand']
  %s0 = inlined_call_operand.hbm [shape: f32[2,64,40], index: 0, kind: input, shape index: {}]
  %s1 = inlined_call_operand.hbm [shape: f32[40,128], index: 1, kind: input, shape index: {}]
  %s2 = inlined_call_operand.hbm [shape: f32[3,3,128,128], index: 2, kind: input, shape index: {}]
  %s3 = inlined_call_operand.hbm [shape: f32[2,4,4,128], index: 3, kind: output, shape index: {}]
  %s4 = sld [smem:[#allocation0]]
  $region57: #{patch_embedding_forward.1} parent=0
    _
  %s6 = ssub.s32 1, %s4
  %s7 = scalar_select 0, %s6, %s4
  $region1: #{patch_embedding_forward.1} parent=0
    #allocation4 [shape = 'u8[65536]{0}', space=vmem, size = 0x10000, scoped, tag = 'input window, operand 0']
    #allocation5 [shape = 's32[2]{0}', space=sflag, size = 0x8, scoped, tag = 'scoped memory for patch_embedding_forward.1']
    #allocation6 [shape = 's32[2]{0}', space=sflag, size = 0x8, scoped, tag = 'scoped memory for patch_embedding_forward.1']
    #allocation7 [shape = 'u8[20480]{0}', space=vmem, size = 0x5000, scoped, tag = 'input window, operand 1, single buffered']
    #allocation8 [shape = 's32[1]{0}', space=sflag, size = 0x4, scoped, tag = 'scoped memory for patch_embedding_forward.1']
    #allocation9 [shape = 'u8[589824]{0}', space=vmem, size = 0x90000, scoped, tag = 'input window, operand 2, single buffered']
    #allocation10 [shape = 'u8[16384]{0}', space=vmem, size = 0x4000, scoped, tag = 'output window, operand 0']
    %8 = vsyncpa [#allocation5], 0
    %s9 = scalar_lea.sflag [#allocation5], 1
    %10 = vsyncpa %s9, 0
    %11 = vsyncpa [#allocation8], 0
    %12 = vsyncpa [#allocation6], 0
    %s13 = scalar_lea.sflag [#allocation6], 1
    %14 = vsyncpa %s13, 0
    loop: start=0, step=1, limit=4
    $region2: #{patch_embedding_forward.1} parent=1 // loop_pre_header
      _
    $region3: #{patch_embedding_forward.1} parent=1 // loop_header
      %s16 = sphi 0, %s20
      %p17 = scmp.ge.s32.totalorder %s16, 4
      %s26 = sphi 0, %s28
      %s29 = sphi 0, %s26
      %s30 = sphi 0, %s29
      %s46 = sphi 0, %s30
      %s50 = sphi 0, %s50
      %s52 = sphi 0, %s50
      %s53 = sphi 0, %s52
      %s67 = sphi 0, %s53
      %s71 = sphi 0, %s71
      %s73 = sphi 0, %s71
      %s74 = sphi 0, %s73
      %s88 = sphi 0, %s74
      %s94 = sphi 0, %s96
      %s97 = sphi 0, %s94
      %s98 = sphi 0, %s97
      %s114 = sphi 0, %s98
    $region4: #{patch_embedding_forward.1} parent=1 // loop_header_branch
      %19 = sbr.rel (%p17) target = $region8
    $region5: #{patch_embedding_forward.1} parent=1 // loop_body
      %s21 = ssub.s32 %s16, 1
      %s22 = ssub.s32 %s16, 2
      %s23 = sadd.s32 %s16, 1
      %s24 = ssub.s32 %s16, %s23
      %p25 = scmp.eq.s32.totalorder %s24, 0
      %s27 = sadd.s32 %s26, 1
      %s28 = scalar_select %p25, %s26, %s27
      %p31 = pneg %p25
      %p32 = scmp.eq.s32.totalorder %s16, 1
      %p33 = por %p31, %p32
      %p34 = scmp.ne.s32.totalorder %s26, %s29
      %p35 = scmp.eq.s32.totalorder %s16, 0
      %p36 = por %p34, %p35
      %p37 = scmp.ne.s32.totalorder %s26, %s29
      %p38 = scmp.eq.s32.totalorder %s21, 1
      %p39 = por %p37, %p38
      %p40 = scmp.ne.s32.totalorder %s29, %s30
      %p41 = scmp.eq.s32.totalorder %s21, 0
      %p42 = por %p40, %p41
      %p43 = scmp.ne.s32.totalorder %s29, %s30
      %p44 = scmp.eq.s32.totalorder %s22, 1
      %p45 = por %p43, %p44
      %p47 = scmp.ne.s32.totalorder %s30, %s46
      %p48 = scmp.eq.s32.totalorder %s22, 0
      %p49 = por %p47, %p48
      %s51 = sadd.s32 %s50, 1
      %p54 = scmp.eq.s32.totalorder %s16, 1
      %p55 = scmp.ne.s32.totalorder %s50, %s52
      %p56 = scmp.eq.s32.totalorder %s16, 0
      %p57 = por %p55, %p56
      %p58 = scmp.ne.s32.totalorder %s50, %s52
      %p59 = scmp.eq.s32.totalorder %s21, 1
      %p60 = por %p58, %p59
      %p61 = scmp.ne.s32.totalorder %s52, %s53
      %p62 = scmp.eq.s32.totalorder %s21, 0
      %p63 = por %p61, %p62
      %p64 = scmp.ne.s32.totalorder %s52, %s53
      %p65 = scmp.eq.s32.totalorder %s22, 1
      %p66 = por %p64, %p65
      %p68 = scmp.ne.s32.totalorder %s53, %s67
      %p69 = scmp.eq.s32.totalorder %s22, 0
      %p70 = por %p68, %p69
      %s72 = sadd.s32 %s71, 1
      %p75 = scmp.eq.s32.totalorder %s16, 1
      %p76 = scmp.ne.s32.totalorder %s71, %s73
      %p77 = scmp.eq.s32.totalorder %s16, 0
      %p78 = por %p76, %p77
      %p79 = scmp.ne.s32.totalorder %s71, %s73
      %p80 = scmp.eq.s32.totalorder %s21, 1
      %p81 = por %p79, %p80
      %p82 = scmp.ne.s32.totalorder %s73, %s74
      %p83 = scmp.eq.s32.totalorder %s21, 0
      %p84 = por %p82, %p83
      %p85 = scmp.ne.s32.totalorder %s73, %s74
      %p86 = scmp.eq.s32.totalorder %s22, 1
      %p87 = por %p85, %p86
      %p89 = scmp.ne.s32.totalorder %s74, %s88
      %p90 = scmp.eq.s32.totalorder %s22, 0
      %p91 = por %p89, %p90
      %s92 = ssub.s32 %s16, %s23
      %p93 = scmp.eq.s32.totalorder %s92, 0
      %s95 = sadd.s32 %s94, 1
      %s96 = scalar_select %p93, %s94, %s95
      %p99 = pneg %p93
      %p100 = scmp.eq.s32.totalorder %s16, 1
      %p101 = por %p99, %p100
      %p102 = scmp.ne.s32.totalorder %s94, %s97
      %p103 = scmp.eq.s32.totalorder %s16, 0
      %p104 = por %p102, %p103
      %p105 = scmp.ne.s32.totalorder %s94, %s97
      %p106 = scmp.eq.s32.totalorder %s21, 1
      %p107 = por %p105, %p106
      %p108 = scmp.ne.s32.totalorder %s97, %s98
      %p109 = scmp.eq.s32.totalorder %s21, 0
      %p110 = por %p108, %p109
      %p111 = scmp.ne.s32.totalorder %s97, %s98
      %p112 = scmp.eq.s32.totalorder %s22, 1
      %p113 = por %p111, %p112
      %p115 = scmp.ne.s32.totalorder %s98, %s114
      %p116 = scmp.eq.s32.totalorder %s22, 0
      %p117 = por %p115, %p116
      %p118 = scmp.le.s32.totalorder 1, %s16
      %p119 = scmp.lt.s32.totalorder %s16, 3
      %p120 = pnand %p118, %p119
      %p121 = pneg %p120
      // Predicated region
      $region9: #{patch_embedding_forward.1} parent=5 // pred_check
        _
      $region10: #{patch_embedding_forward.1} parent=5 // pred_check_branch
        %123 = sbr.rel (%p120) target = $region12
      $region11: #{patch_embedding_forward.1} parent=5 // pred_region
        %s124 = ssub.s32 %s16, 1
        // Predicated region
        $region13: #{patch_embedding_forward.1} parent=11 // pred_check
          %p125 = pneg %p63
        $region14: #{patch_embedding_forward.1} parent=11 // pred_check_branch
          %127 = sbr.rel (%p125) target = $region16
        $region15: #{patch_embedding_forward.1} parent=11 // pred_region
          %s129 = ssub.s32 640, 640
          %130 = vsyncadd [#allocation8], %s129
          %s131 = sshll.u32 [#allocation7], 4
          %s132 = int_to_ptr.vmem [resolvable:$true] %s131
          %137 = dma.hbm_to_vmem [thread:$0]  %s1, 640, %s132, [#allocation8], 128, 128, 8
        $region16: #{patch_embedding_forward.1} parent=11 // pred_fallthru
          _
        // Predicated region
        $region17: #{patch_embedding_forward.1} parent=11 // pred_check
          %p138 = pneg %p84
        $region18: #{patch_embedding_forward.1} parent=11 // pred_check_branch
          %140 = sbr.rel (%p138) target = $region20
        $region19: #{patch_embedding_forward.1} parent=11 // pred_region
          %s142 = ssub.s32 18432, 18432
          %143 = vsyncadd [#allocation8], %s142
          %s144 = sshll.u32 [#allocation9], 4
          %s145 = int_to_ptr.vmem [resolvable:$true] %s144
          %150 = dma.hbm_to_vmem [thread:$0]  %s2, 18432, %s145, [#allocation8], 128, 128, 8
        $region20: #{patch_embedding_forward.1} parent=11 // pred_fallthru
          _
      $region12: #{patch_embedding_forward.1} parent=5 // pred_fallthru
        _
      %p151 = scmp.lt.s32.totalorder %s16, 2
      // Predicated region
      $region21: #{patch_embedding_forward.1} parent=5 // pred_check
        %p152 = pneg %p151
      $region22: #{patch_embedding_forward.1} parent=5 // pred_check_branch
        %154 = sbr.rel (%p152) target = $region24
      $region23: #{patch_embedding_forward.1} parent=5 // pred_region
        // Predicated region
        $region25: #{patch_embedding_forward.1} parent=23 // pred_check
          %p155 = pneg %p36
        $region26: #{patch_embedding_forward.1} parent=23 // pred_check_branch
          %157 = sbr.rel (%p155) target = $region28
        $region27: #{patch_embedding_forward.1} parent=23 // pred_region
          %s158 = sand.u32 %s26, 1
          %s159 = scalar_lea.sflag [#allocation5], %s158
          %s160 = sand.u32 %s26, 1
          %s161 = smul.addr %s160, 64
          %s162 = scalar_lea.vmem [#allocation4], %s161
          %s164 = ssub.s32 1024, 1024
          %165 = vsyncadd %s159, %s164
          %s166 = smul.addr %s16, 8
          %s167 = smul.addr %s166, 128
          %s168 = scalar_lea.hbm %s0, %s167
          %s169 = sshll.u32 %s162, 4
          %s170 = int_to_ptr.vmem [resolvable:$true] %s169
          %175 = dma.hbm_to_vmem [thread:$0]  %s168, 1024, %s170, %s159, 128, 128, 8
        $region28: #{patch_embedding_forward.1} parent=23 // pred_fallthru
          _
      $region24: #{patch_embedding_forward.1} parent=5 // pred_fallthru
        _
      %p176 = scmp.le.s32.totalorder 1, %s16
      %p177 = scmp.lt.s32.totalorder %s16, 3
      %p178 = pnand %p176, %p177
      %p179 = pneg %p178
      // Predicated region
      $region29: #{patch_embedding_forward.1} parent=5 // pred_check
        _
      $region30: #{patch_embedding_forward.1} parent=5 // pred_check_branch
        %181 = sbr.rel (%p178) target = $region32
      $region31: #{patch_embedding_forward.1} parent=5 // pred_region
        %s182 = ssub.s32 %s16, 1
        %s183 = sand.u32 %s29, 1
        %s184 = scalar_lea.sflag [#allocation5], %s183
        %s185 = sand.u32 %s29, 1
        %s186 = smul.addr %s185, 64
        %s187 = scalar_lea.vmem [#allocation4], %s186
        // Predicated region
        $region33: #{patch_embedding_forward.1} parent=31 // pred_check
          %p188 = pneg %p42
        $region34: #{patch_embedding_forward.1} parent=31 // pred_check_branch
          %190 = sbr.rel (%p188) target = $region36
        $region35: #{patch_embedding_forward.1} parent=31 // pred_region
          %191 = dma.done %s184, 1024
        $region36: #{patch_embedding_forward.1} parent=31 // pred_fallthru
          _
        // Predicated region
        $region37: #{patch_embedding_forward.1} parent=31 // pred_check
          %p192 = pneg %p63
        $region38: #{patch_embedding_forward.1} parent=31 // pred_check_branch
          %194 = sbr.rel (%p192) target = $region40
        $region39: #{patch_embedding_forward.1} parent=31 // pred_region
          %195 = dma.done [#allocation8], 640
        $region40: #{patch_embedding_forward.1} parent=31 // pred_fallthru
          _
        // Predicated region
        $region41: #{patch_embedding_forward.1} parent=31 // pred_check
          %p196 = pneg %p84
        $region42: #{patch_embedding_forward.1} parent=31 // pred_check_branch
          %198 = sbr.rel (%p196) target = $region44
        $region43: #{patch_embedding_forward.1} parent=31 // pred_region
          %199 = dma.done [#allocation8], 18432
        $region44: #{patch_embedding_forward.1} parent=31 // pred_fallthru
          _
        %s200 = sand.u32 %s29, 1
        %s201 = scalar_lea.sflag [#allocation5], %s200
        %s202 = sand.u32 %s29, 1
        %s203 = smul.addr %s202, 64
        %s204 = scalar_lea.vmem [#allocation4], %s203
        %p205 = pneg %p42
        %p206 = pneg %p39
        %p207 = pneg %p63
        %p208 = pneg %p60
        %p209 = pneg %p84
        %p210 = pneg %p81
        %p211 = pneg %p110
        %p212 = pneg %p107
        %s213 = sand.u32 %s97, 1
        %s214 = scalar_lea.sflag [#allocation6], %s213
        %s215 = sand.u32 %s97, 1
        %s216 = smul.addr %s215, 16
        %s217 = scalar_lea.vmem [#allocation10], %s216
        %218 = vst [vmem:[#allocation2] sm:$0xff] 0.0
        %219 = vst [vmem:[#allocation2 + $0x8] sm:$0x3] 0.0
        %s220 = scalar_lea.vmem [#allocation2], 144
        %221 = vst [vmem:[%s220] sm:$0xff] 0.0
        %222 = vst [vmem:[%s220 + $0x8] sm:$0x3] 0.0
        %223 = vst [vmem:[#allocation2] sm:$0x1] 0.0
        %224 = vst [vmem:[#allocation2 + $0x10] sm:$0x1] 0.0
        %225 = vst [vmem:[#allocation2 + $0x20] sm:$0x1] 0.0
        %226 = vst [vmem:[#allocation2 + $0x30] sm:$0x1] 0.0
        %227 = vst [vmem:[#allocation2 + $0x40] sm:$0x1] 0.0
        %228 = vst [vmem:[#allocation2 + $0x50] sm:$0x1] 0.0
        %229 = vst [vmem:[#allocation2 + $0x60] sm:$0x1] 0.0
        %230 = vst [vmem:[#allocation2 + $0x70] sm:$0x1] 0.0
        %231 = vst [vmem:[#allocation2 + $0x80] sm:$0x1] 0.0
        %232 = vst [vmem:[#allocation2 + $0x90] sm:$0x1] 0.0
        %233 = vst [vmem:[#allocation2 + $0x9] sm:$0x1] 0.0
        %234 = vst [vmem:[#allocation2 + $0x19] sm:$0x1] 0.0
        %235 = vst [vmem:[#allocation2 + $0x29] sm:$0x1] 0.0
        %236 = vst [vmem:[#allocation2 + $0x39] sm:$0x1] 0.0
        %237 = vst [vmem:[#allocation2 + $0x49] sm:$0x1] 0.0
        %238 = vst [vmem:[#allocation2 + $0x59] sm:$0x1] 0.0
        %239 = vst [vmem:[#allocation2 + $0x69] sm:$0x1] 0.0
        %240 = vst [vmem:[#allocation2 + $0x79] sm:$0x1] 0.0
        %241 = vst [vmem:[#allocation2 + $0x89] sm:$0x1] 0.0
        %242 = vst [vmem:[#allocation2 + $0x99] sm:$0x1] 0.0
        %243 = vst [vmem:[#allocation3] sm:$0x3f] 0.0
        %s244 = scalar_lea.vmem [#allocation3], 40
        %245 = vst [vmem:[%s244] sm:$0x3f] 0.0
        %246 = vst [vmem:[#allocation3] sm:$0x1] 0.0
        %247 = vst [vmem:[#allocation3 + $0x8] sm:$0x1] 0.0
        %248 = vst [vmem:[#allocation3 + $0x10] sm:$0x1] 0.0
        %249 = vst [vmem:[#allocation3 + $0x18] sm:$0x1] 0.0
        %250 = vst [vmem:[#allocation3 + $0x20] sm:$0x1] 0.0
        %251 = vst [vmem:[#allocation3 + $0x28] sm:$0x1] 0.0
        %252 = vst [vmem:[#allocation3 + $0x5] sm:$0x1] 0.0
        %253 = vst [vmem:[#allocation3 + $0xd] sm:$0x1] 0.0
        %254 = vst [vmem:[#allocation3 + $0x15] sm:$0x1] 0.0
        %255 = vst [vmem:[#allocation3 + $0x1d] sm:$0x1] 0.0
        %256 = vst [vmem:[#allocation3 + $0x25] sm:$0x1] 0.0
        %257 = vst [vmem:[#allocation3 + $0x2d] sm:$0x1] 0.0
        %v258 = vld [vmem:[#allocation7] sm:$0xff]
        %v259 = vld [vmem:[#allocation7 + $0x8] sm:$0xff]
        %v260 = vld [vmem:[#allocation7 + $0x10] sm:$0xff]
        %v261 = vld [vmem:[#allocation7 + $0x18] sm:$0xff]
        %v262 = vld [vmem:[#allocation7 + $0x20] sm:$0xff]
        %v263 = vld [vmem:[%s187] sm:$0xff]
        %v264 = vld [vmem:[%s187 + $0x8] sm:$0xff]
        %v265 = vld [vmem:[%s187 + $0x10] sm:$0xff]
        %v266 = vld [vmem:[%s187 + $0x18] sm:$0xff]
        %v267 = vld [vmem:[%s187 + $0x20] sm:$0xff]
        %v268 = vld [vmem:[%s187 + $0x28] sm:$0xff]
        %v269 = vld [vmem:[%s187 + $0x30] sm:$0xff]
        %v270 = vld [vmem:[%s187 + $0x38] sm:$0xff]
        %vm271 = vcmask 326656
        %v273 = vsel %vm271, %v263, 0
        %v276 = vsel %vm271, %v264, 0
        %v279 = vsel %vm271, %v265, 0
        %v282 = vsel %vm271, %v266, 0
        %v285 = vsel %vm271, %v267, 0
        %v288 = vsel %vm271, %v268, 0
        %v291 = vsel %vm271, %v269, 0
        %v294 = vsel %vm271, %v270, 0
        %296 = vmatprep.subr.mxu0 0.0
        %297 = vmatpush1.msra.mxu0 %v258
        %298 = vmatprep.subr.mxu0 0.0
        %299 = vmatpush1.msra.mxu0 %v259
        %300 = vmatprep.subr.mxu0 0.0
        %301 = vmatpush1.msra.mxu0 %v260
        %302 = vmatprep.subr.mxu0 0.0
        %303 = vmatpush1.msra.mxu0 %v261
        %304 = vmatprep.subr.mxu0 0.0
        %305 = vmatpush1.msra.mxu0 %v262
        %306 = vmatprep.subr.mxu0 0.0
        %307 = vmatpush1.msra.mxu0 0.0
        %308 = vmatprep.subr.mxu0 0.0
        %309 = vmatpush1.msra.mxu0 0.0
        %310 = vmatprep.subr.mxu0 0.0
        %311 = vmatpush1.msra.mxu0 0.0
        %312 = vmatprep.subr.mxu0 0.0
        %313 = vmatpush1.msra.mxu0 0.0
        %314 = vmatprep.subr.mxu0 0.0
        %315 = vmatpush1.msra.mxu0 0.0
        %316 = vmatprep.subr.mxu0 0.0
        %317 = vmatpush1.msra.mxu0 0.0
        %318 = vmatprep.subr.mxu0 0.0
        %319 = vmatpush1.msra.mxu0 0.0
        %320 = vmatprep.subr.mxu0 0.0
        %321 = vmatpush1.msra.mxu0 0.0
        %322 = vmatprep.subr.mxu0 0.0
        %323 = vmatpush1.msra.mxu0 0.0
        %324 = vmatprep.subr.mxu0 0.0
        %325 = vmatpush1.msra.mxu0 0.0
        %326 = vmatprep.subr.mxu0 0.0
        %327 = vmatpush1.msra.mxu0 0.0
        %328 = vmatprep.subr.mxu0 0.0
        %329 = vmatpush1.msra.mxu0 0.0
        %330 = vmatprep.subr.mxu0 0.0
        %331 = vmatpush1.msra.mxu0 0.0
        %332 = vmatprep.subr.mxu0 0.0
        %333 = vmatpush1.msra.mxu0 0.0
        %334 = vmatprep.subr.mxu0 0.0
        %335 = vmatpush1.msra.mxu0 0.0
        %336 = vmatprep.subr.mxu0 0.0
        %337 = vmatpush1.msra.mxu0 0.0
        %338 = vmatprep.subr.mxu0 0.0
        %339 = vmatpush1.msra.mxu0 0.0
        %340 = vmatprep.subr.mxu0 0.0
        %341 = vmatpush1.msra.mxu0 0.0
        %342 = vmatprep.subr.mxu0 0.0
        %343 = vmatpush1.msra.mxu0 0.0
        %344 = vmatprep.subr.mxu0 0.0
        %345 = vmatpush1.msra.mxu0 0.0
        %346 = vmatprep.subr.mxu0 0.0
        %347 = vmatpush1.msra.mxu0 0.0
        %348 = vmatprep.subr.mxu0 0.0
        %349 = vmatpush1.msra.mxu0 0.0
        %350 = vmatprep.subr.mxu0 0.0
        %351 = vmatpush1.msra.mxu0 0.0
        %352 = vmatprep.subr.mxu0 0.0
        %353 = vmatpush1.msra.mxu0 0.0
        %354 = vmatprep.subr.mxu0 0.0
        %355 = vmatpush1.msra.mxu0 0.0
        %356 = vmatprep.subr.mxu0 0.0
        %357 = vmatpush1.msra.mxu0 0.0
        %358 = vmatprep.subr.mxu0 0.0
        %359 = vmatpush1.msra.mxu0 0.0
        %360 = vmatprep.mubr.f32.mxu0 0.0
        %361 = vmatmul.mubr.f32.gmra.mrb[0].mxu0 %v273
        %v362 = vpop.f32.mrb[0].mxu0
        %v363 = vadd.f32 0.0, %v362
        %v364 = vpop.f32.mrb[0].mxu0
        %365 = vmatprep.mubr.f32.mxu0 0.0
        %366 = vmatmul.mubr.f32.gmra.mrb[0].mxu0 %v276
        %v367 = vpop.f32.mrb[0].mxu0
        %v368 = vadd.f32 0.0, %v367
        %v369 = vpop.f32.mrb[0].mxu0
        %370 = vmatprep.mubr.f32.mxu0 0.0
        %371 = vmatmul.mubr.f32.gmra.mrb[0].mxu0 %v279
        %v372 = vpop.f32.mrb[0].mxu0
        %v373 = vadd.f32 0.0, %v372
        %v374 = vpop.f32.mrb[0].mxu0
        %375 = vmatprep.mubr.f32.mxu0 0.0
        %376 = vmatmul.mubr.f32.gmra.mrb[0].mxu0 %v282
        %v377 = vpop.f32.mrb[0].mxu0
        %v378 = vadd.f32 0.0, %v377
        %v379 = vpop.f32.mrb[0].mxu0
        %380 = vmatprep.mubr.f32.mxu0 0.0
        %381 = vmatmul.mubr.f32.gmra.mrb[0].mxu0 %v285
        %v382 = vpop.f32.mrb[0].mxu0
        %v383 = vadd.f32 0.0, %v382
        %v384 = vpop.f32.mrb[0].mxu0
        %385 = vmatprep.mubr.f32.mxu0 0.0
        %386 = vmatmul.mubr.f32.gmra.mrb[0].mxu0 %v288
        %v387 = vpop.f32.mrb[0].mxu0
        %v388 = vadd.f32 0.0, %v387
        %v389 = vpop.f32.mrb[0].mxu0
        %390 = vmatprep.mubr.f32.mxu0 0.0
        %391 = vmatmul.mubr.f32.gmra.mrb[0].mxu0 %v291
        %v392 = vpop.f32.mrb[0].mxu0
        %v393 = vadd.f32 0.0, %v392
        %v394 = vpop.f32.mrb[0].mxu0
        %395 = vmatprep.mubr.f32.mxu0 0.0
        %396 = vmatmul.mubr.f32.gmra.mrb[0].mxu0 %v294
        %v397 = vpop.f32.mrb[0].mxu0
        %v398 = vadd.f32 0.0, %v397
        %v399 = vpop.f32.mrb[0].mxu0
        %400 = vdwg.mxu0
        %v401 = vadd.f32 %v363, %v368
        %v402 = vadd.f32 %v401, %v373
        %v403 = vadd.f32 %v402, %v378
        %v404 = vadd.f32 %v403, %v383
        %v405 = vadd.f32 %v404, %v388
        %v406 = vadd.f32 %v405, %v393
        %v407 = vadd.f32 %v406, %v398
        %v408 = vrot.slane %v407, 4
        %v409 = vadd.f32 %v407, %v408
        %v410 = vrot.slane %v409, 2
        %v411 = vadd.f32 %v409, %v410
        %v412 = vrot.slane %v411, 1
        %v413 = vadd.f32 %v411, %v412
        %v414 = vadd.f32 %v413, 0.0
        %v415 = vmul.f32 %v363, %v363
        %v416 = vmul.f32 %v368, %v368
        %v417 = vmul.f32 %v373, %v373
        %v418 = vmul.f32 %v378, %v378
        %v419 = vmul.f32 %v383, %v383
        %v420 = vmul.f32 %v388, %v388
        %v421 = vmul.f32 %v393, %v393
        %v422 = vmul.f32 %v398, %v398
        %v423 = vadd.f32 %v415, %v416
        %v424 = vadd.f32 %v423, %v417
        %v425 = vadd.f32 %v424, %v418
        %v426 = vadd.f32 %v425, %v419
        %v427 = vadd.f32 %v426, %v420
        %v428 = vadd.f32 %v427, %v421
        %v429 = vadd.f32 %v428, %v422
        %v430 = vrot.slane %v429, 4
        %v431 = vadd.f32 %v429, %v430
        %v432 = vrot.slane %v431, 2
        %v433 = vadd.f32 %v431, %v432
        %v434 = vrot.slane %v433, 1
        %v435 = vadd.f32 %v433, %v434
        %v436 = vadd.f32 %v435, 0.0
        %s437 = scalar_lea.vmem [#allocation2], 16
        %438 = vst [vmem:[%s437 + $0x1] sm:$0xff] %v363
        %439 = vst [vmem:[%s437 + $0x11] sm:$0xff] %v368
        %440 = vst [vmem:[%s437 + $0x21] sm:$0xff] %v373
        %441 = vst [vmem:[%s437 + $0x31] sm:$0xff] %v378
        %442 = vst [vmem:[%s437 + $0x41] sm:$0xff] %v383
        %443 = vst [vmem:[%s437 + $0x51] sm:$0xff] %v388
        %444 = vst [vmem:[%s437 + $0x61] sm:$0xff] %v393
        %445 = vst [vmem:[%s437 + $0x71] sm:$0xff] %v398
        %v446 = vmul.f32 %v414, 0.015625
        %v447 = vmul.f32 %v436, 0.015625
        %v448 = vmul.f32 %v446, %v446
        %v449 = vsub.f32 %v447, %v448
        %v450 = vmax.f32 %v449, 0.0
        %v451 = vadd.f32 %v450, 1e-05
        %v452 = vrsqrt.pop %v451
        %v453 = vld [vmem:[%s437 + $0x1] sm:$0xff]
        %v454 = vld [vmem:[%s437 + $0x11] sm:$0xff]
        %v455 = vld [vmem:[%s437 + $0x21] sm:$0xff]
        %v456 = vld [vmem:[%s437 + $0x31] sm:$0xff]
        %v457 = vld [vmem:[%s437 + $0x41] sm:$0xff]
        %v458 = vld [vmem:[%s437 + $0x51] sm:$0xff]
        %v459 = vld [vmem:[%s437 + $0x61] sm:$0xff]
        %v460 = vld [vmem:[%s437 + $0x71] sm:$0xff]
        %v461 = vsub.f32 %v453, %v446
        %v462 = vsub.f32 %v454, %v446
        %v463 = vsub.f32 %v455, %v446
        %v464 = vsub.f32 %v456, %v446
        %v465 = vsub.f32 %v457, %v446
        %v466 = vsub.f32 %v458, %v446
        %v467 = vsub.f32 %v459, %v446
        %v468 = vsub.f32 %v460, %v446
        %v469 = vmul.f32 %v461, %v452
        %v470 = vmul.f32 %v462, %v452
        %v471 = vmul.f32 %v463, %v452
        %v472 = vmul.f32 %v464, %v452
        %v473 = vmul.f32 %v465, %v452
        %v474 = vmul.f32 %v466, %v452
        %v475 = vmul.f32 %v467, %v452
        %v476 = vmul.f32 %v468, %v452
        %v477 = vmax.f32 %v469, 0.0
        %v478 = vmax.f32 %v470, 0.0
        %v479 = vmax.f32 %v471, 0.0
        %v480 = vmax.f32 %v472, 0.0
        %v481 = vmax.f32 %v473, 0.0
        %v482 = vmax.f32 %v474, 0.0
        %v483 = vmax.f32 %v475, 0.0
        %v484 = vmax.f32 %v476, 0.0
        %485 = vst [vmem:[%s437 + $0x1] sm:$0xff] %v477
        %486 = vst [vmem:[%s437 + $0x11] sm:$0xff] %v478
        %487 = vst [vmem:[%s437 + $0x21] sm:$0xff] %v479
        %488 = vst [vmem:[%s437 + $0x31] sm:$0xff] %v480
        %489 = vst [vmem:[%s437 + $0x41] sm:$0xff] %v481
        %490 = vst [vmem:[%s437 + $0x51] sm:$0xff] %v482
        %491 = vst [vmem:[%s437 + $0x61] sm:$0xff] %v483
        %492 = vst [vmem:[%s437 + $0x71] sm:$0xff] %v484
        %v493 = vld [vmem:[#allocation9] sm:$0xff]
        %v494 = vld [vmem:[#allocation9 + $0x8] sm:$0xff]
        %v495 = vld [vmem:[#allocation9 + $0x10] sm:$0xff]
        %v496 = vld [vmem:[#allocation9 + $0x18] sm:$0xff]
        %v497 = vld [vmem:[#allocation9 + $0x20] sm:$0xff]
        %v498 = vld [vmem:[#allocation9 + $0x28] sm:$0xff]
        %v499 = vld [vmem:[#allocation9 + $0x30] sm:$0xff]
        %v500 = vld [vmem:[#allocation9 + $0x38] sm:$0xff]
        %v501 = vld [vmem:[#allocation9 + $0x40] sm:$0xff]
        %v502 = vld [vmem:[#allocation9 + $0x48] sm:$0xff]
        %v503 = vld [vmem:[#allocation9 + $0x50] sm:$0xff]
        %v504 = vld [vmem:[#allocation9 + $0x58] sm:$0xff]
        %v505 = vld [vmem:[#allocation9 + $0x60] sm:$0xff]
        %v506 = vld [vmem:[#allocation9 + $0x68] sm:$0xff]
        %v507 = vld [vmem:[#allocation9 + $0x70] sm:$0xff]
        %v508 = vld [vmem:[#allocation9 + $0x78] sm:$0xff]
        %s509 = scalar_lea.vmem [#allocation9], 128
        %v510 = vld [vmem:[%s509] sm:$0xff]
        %v511 = vld [vmem:[%s509 + $0x8] sm:$0xff]
        %v512 = vld [vmem:[%s509 + $0x10] sm:$0xff]
        %v513 = vld [vmem:[%s509 + $0x18] sm:$0xff]
        %v514 = vld [vmem:[%s509 + $0x20] sm:$0xff]
        %v515 = vld [vmem:[%s509 + $0x28] sm:$0xff]
        %v516 = vld [vmem:[%s509 + $0x30] sm:$0xff]
        %v517 = vld [vmem:[%s509 + $0x38] sm:$0xff]
        %v518 = vld [vmem:[%s509 + $0x40] sm:$0xff]
        %v519 = vld [vmem:[%s509 + $0x48] sm:$0xff]
        %v520 = vld [vmem:[%s509 + $0x50] sm:$0xff]
        %v521 = vld [vmem:[%s509 + $0x58] sm:$0xff]
        %v522 = vld [vmem:[%s509 + $0x60] sm:$0xff]
        %v523 = vld [vmem:[%s509 + $0x68] sm:$0xff]
        %v524 = vld [vmem:[%s509 + $0x70] sm:$0xff]
        %v525 = vld [vmem:[%s509 + $0x78] sm:$0xff]
        %s526 = scalar_lea.vmem [#allocation9], 256
        %v527 = vld [vmem:[%s526] sm:$0xff]
        %v528 = vld [vmem:[%s526 + $0x8] sm:$0xff]
        %v529 = vld [vmem:[%s526 + $0x10] sm:$0xff]
        %v530 = vld [vmem:[%s526 + $0x18] sm:$0xff]
        %v531 = vld [vmem:[%s526 + $0x20] sm:$0xff]
        %v532 = vld [vmem:[%s526 + $0x28] sm:$0xff]
        %v533 = vld [vmem:[%s526 + $0x30] sm:$0xff]
        %v534 = vld [vmem:[%s526 + $0x38] sm:$0xff]
        %v535 = vld [vmem:[%s526 + $0x40] sm:$0xff]
        %v536 = vld [vmem:[%s526 + $0x48] sm:$0xff]
        %v537 = vld [vmem:[%s526 + $0x50] sm:$0xff]
        %v538 = vld [vmem:[%s526 + $0x58] sm:$0xff]
        %v539 = vld [vmem:[%s526 + $0x60] sm:$0xff]
        %v540 = vld [vmem:[%s526 + $0x68] sm:$0xff]
        %v541 = vld [vmem:[%s526 + $0x70] sm:$0xff]
        %v542 = vld [vmem:[%s526 + $0x78] sm:$0xff]
        %s543 = scalar_lea.vmem [#allocation9], 384
        %v544 = vld [vmem:[%s543] sm:$0xff]
        %v545 = vld [vmem:[%s543 + $0x8] sm:$0xff]
        %v546 = vld [vmem:[%s543 + $0x10] sm:$0xff]
        %v547 = vld [vmem:[%s543 + $0x18] sm:$0xff]
        %v548 = vld [vmem:[%s543 + $0x20] sm:$0xff]
        %v549 = vld [vmem:[%s543 + $0x28] sm:$0xff]
        %v550 = vld [vmem:[%s543 + $0x30] sm:$0xff]
        %v551 = vld [vmem:[%s543 + $0x38] sm:$0xff]
        %v552 = vld [vmem:[%s543 + $0x40] sm:$0xff]
        %v553 = vld [vmem:[%s543 + $0x48] sm:$0xff]
        %v554 = vld [vmem:[%s543 + $0x50] sm:$0xff]
        %v555 = vld [vmem:[%s543 + $0x58] sm:$0xff]
        %v556 = vld [vmem:[%s543 + $0x60] sm:$0xff]
        %v557 = vld [vmem:[%s543 + $0x68] sm:$0xff]
        %v558 = vld [vmem:[%s543 + $0x70] sm:$0xff]
        %v559 = vld [vmem:[%s543 + $0x78] sm:$0xff]
        %s560 = scalar_lea.vmem [#allocation9], 512
        %v561 = vld [vmem:[%s560] sm:$0xff]
        %v562 = vld [vmem:[%s560 + $0x8] sm:$0xff]
        %v563 = vld [vmem:[%s560 + $0x10] sm:$0xff]
        %v564 = vld [vmem:[%s560 + $0x18] sm:$0xff]
        %v565 = vld [vmem:[%s560 + $0x20] sm:$0xff]
        %v566 = vld [vmem:[%s560 + $0x28] sm:$0xff]
        %v567 = vld [vmem:[%s560 + $0x30] sm:$0xff]
        %v568 = vld [vmem:[%s560 + $0x38] sm:$0xff]
        %v569 = vld [vmem:[%s560 + $0x40] sm:$0xff]
        %v570 = vld [vmem:[%s560 + $0x48] sm:$0xff]
        %v571 = vld [vmem:[%s560 + $0x50] sm:$0xff]
        %v572 = vld [vmem:[%s560 + $0x58] sm:$0xff]
        %v573 = vld [vmem:[%s560 + $0x60] sm:$0xff]
        %v574 = vld [vmem:[%s560 + $0x68] sm:$0xff]
        %v575 = vld [vmem:[%s560 + $0x70] sm:$0xff]
        %v576 = vld [vmem:[%s560 + $0x78] sm:$0xff]
        %s577 = scalar_lea.vmem [#allocation9], 640
        %v578 = vld [vmem:[%s577] sm:$0xff]
        %v579 = vld [vmem:[%s577 + $0x8] sm:$0xff]
        %v580 = vld [vmem:[%s577 + $0x10] sm:$0xff]
        %v581 = vld [vmem:[%s577 + $0x18] sm:$0xff]
        %v582 = vld [vmem:[%s577 + $0x20] sm:$0xff]
        %v583 = vld [vmem:[%s577 + $0x28] sm:$0xff]
        %v584 = vld [vmem:[%s577 + $0x30] sm:$0xff]
        %v585 = vld [vmem:[%s577 + $0x38] sm:$0xff]
        %v586 = vld [vmem:[%s577 + $0x40] sm:$0xff]
        %v587 = vld [vmem:[%s577 + $0x48] sm:$0xff]
        %v588 = vld [vmem:[%s577 + $0x50] sm:$0xff]
        %v589 = vld [vmem:[%s577 + $0x58] sm:$0xff]
        %v590 = vld [vmem:[%s577 + $0x60] sm:$0xff]
        %v591 = vld [vmem:[%s577 + $0x68] sm:$0xff]
        %v592 = vld [vmem:[%s577 + $0x70] sm:$0xff]
        %v593 = vld [vmem:[%s577 + $0x78] sm:$0xff]
        %s594 = scalar_lea.vmem [#allocation9], 768
        %v595 = vld [vmem:[%s594] sm:$0xff]
        %v596 = vld [vmem:[%s594 + $0x8] sm:$0xff]
        %v597 = vld [vmem:[%s594 + $0x10] sm:$0xff]
        %v598 = vld [vmem:[%s594 + $0x18] sm:$0xff]
        %v599 = vld [vmem:[%s594 + $0x20] sm:$0xff]
        %v600 = vld [vmem:[%s594 + $0x28] sm:$0xff]
        %v601 = vld [vmem:[%s594 + $0x30] sm:$0xff]
        %v602 = vld [vmem:[%s594 + $0x38] sm:$0xff]
        %v603 = vld [vmem:[%s594 + $0x40] sm:$0xff]
        %v604 = vld [vmem:[%s594 + $0x48] sm:$0xff]
        %v605 = vld [vmem:[%s594 + $0x50] sm:$0xff]
        %v606 = vld [vmem:[%s594 + $0x58] sm:$0xff]
        %v607 = vld [vmem:[%s594 + $0x60] sm:$0xff]
        %v608 = vld [vmem:[%s594 + $0x68] sm:$0xff]
        %v609 = vld [vmem:[%s594 + $0x70] sm:$0xff]
        %v610 = vld [vmem:[%s594 + $0x78] sm:$0xff]
        %s611 = scalar_lea.vmem [#allocation9], 896
        %v612 = vld [vmem:[%s611] sm:$0xff]
        %v613 = vld [vmem:[%s611 + $0x8] sm:$0xff]
        %v614 = vld [vmem:[%s611 + $0x10] sm:$0xff]
        %v615 = vld [vmem:[%s611 + $0x18] sm:$0xff]
        %v616 = vld [vmem:[%s611 + $0x20] sm:$0xff]
        %v617 = vld [vmem:[%s611 + $0x28] sm:$0xff]
        %v618 = vld [vmem:[%s611 + $0x30] sm:$0xff]
        %v619 = vld [vmem:[%s611 + $0x38] sm:$0xff]
        %v620 = vld [vmem:[%s611 + $0x40] sm:$0xff]
        %v621 = vld [vmem:[%s611 + $0x48] sm:$0xff]
        %v622 = vld [vmem:[%s611 + $0x50] sm:$0xff]
        %v623 = vld [vmem:[%s611 + $0x58] sm:$0xff]
        %v624 = vld [vmem:[%s611 + $0x60] sm:$0xff]
        %v625 = vld [vmem:[%s611 + $0x68] sm:$0xff]
        %v626 = vld [vmem:[%s611 + $0x70] sm:$0xff]
        %v627 = vld [vmem:[%s611 + $0x78] sm:$0xff]
        %s628 = scalar_lea.vmem [#allocation9], 1024
        %v629 = vld [vmem:[%s628] sm:$0xff]
        %v630 = vld [vmem:[%s628 + $0x8] sm:$0xff]
        %v631 = vld [vmem:[%s628 + $0x10] sm:$0xff]
        %v632 = vld [vmem:[%s628 + $0x18] sm:$0xff]
        %v633 = vld [vmem:[%s628 + $0x20] sm:$0xff]
        %v634 = vld [vmem:[%s628 + $0x28] sm:$0xff]
        %v635 = vld [vmem:[%s628 + $0x30] sm:$0xff]
        %v636 = vld [vmem:[%s628 + $0x38] sm:$0xff]
        %v637 = vld [vmem:[%s628 + $0x40] sm:$0xff]
        %v638 = vld [vmem:[%s628 + $0x48] sm:$0xff]
        %v639 = vld [vmem:[%s628 + $0x50] sm:$0xff]
        %v640 = vld [vmem:[%s628 + $0x58] sm:$0xff]
        %v641 = vld [vmem:[%s628 + $0x60] sm:$0xff]
        %v642 = vld [vmem:[%s628 + $0x68] sm:$0xff]
        %v643 = vld [vmem:[%s628 + $0x70] sm:$0xff]
        %v644 = vld [vmem:[%s628 + $0x78] sm:$0xff]
        %v645 = vld [vmem:[#allocation2] ss:$2 sm:$0xf]
        %s646 = scalar_lea.vmem [#allocation2], 32
        %v647 = vld [vmem:[%s646] ss:$2 sm:$0xf]
        %s648 = scalar_lea.vmem [#allocation2], 64
        %v649 = vld [vmem:[%s648] ss:$2 sm:$0xf]
        %s650 = scalar_lea.vmem [#allocation2], 96
        %v651 = vld [vmem:[%s650] ss:$2 sm:$0xf]
        %s652 = scalar_lea.vmem [#allocation2], 1
        %v653 = vld [vmem:[%s652] ss:$2 sm:$0xf]
        %s654 = scalar_lea.vmem [#allocation2], 33
        %v655 = vld [vmem:[%s654] ss:$2 sm:$0xf]
        %s656 = scalar_lea.vmem [#allocation2], 65
        %v657 = vld [vmem:[%s656] ss:$2 sm:$0xf]
        %s658 = scalar_lea.vmem [#allocation2], 97
        %v659 = vld [vmem:[%s658] ss:$2 sm:$0xf]
        %v664 = vcombine.low %v653, %v655
        %v665 = vcombine.low %v657, %v659
        %668 = vmatprep.subr.mxu0 0.0
        %669 = vmatpush1.msra.mxu0 %v510
        %670 = vmatprep.subr.mxu0 0.0
        %671 = vmatpush1.msra.mxu0 %v511
        %672 = vmatprep.subr.mxu0 0.0
        %673 = vmatpush1.msra.mxu0 %v512
        %674 = vmatprep.subr.mxu0 0.0
        %675 = vmatpush1.msra.mxu0 %v513
        %676 = vmatprep.subr.mxu0 0.0
        %677 = vmatpush1.msra.mxu0 %v514
        %678 = vmatprep.subr.mxu0 0.0
        %679 = vmatpush1.msra.mxu0 %v515
        %680 = vmatprep.subr.mxu0 0.0
        %681 = vmatpush1.msra.mxu0 %v516
        %682 = vmatprep.subr.mxu0 0.0
        %683 = vmatpush1.msra.mxu0 %v517
        %684 = vmatprep.subr.mxu0 0.0
        %685 = vmatpush1.msra.mxu0 %v518
        %686 = vmatprep.subr.mxu0 0.0
        %687 = vmatpush1.msra.mxu0 %v519
        %688 = vmatprep.subr.mxu0 0.0
        %689 = vmatpush1.msra.mxu0 %v520
        %690 = vmatprep.subr.mxu0 0.0
        %691 = vmatpush1.msra.mxu0 %v521
        %692 = vmatprep.subr.mxu0 0.0
        %693 = vmatpush1.msra.mxu0 %v522
        %694 = vmatprep.subr.mxu0 0.0
        %695 = vmatpush1.msra.mxu0 %v523
        %696 = vmatprep.subr.mxu0 0.0
        %697 = vmatpush1.msra.mxu0 %v524
        %698 = vmatprep.subr.mxu0 0.0
        %699 = vmatpush1.msra.mxu0 %v525
        %700 = vmatprep.subr.mxu0 0.0
        %701 = vmatpush1.msra.mxu0 0.0
        %702 = vmatprep.subr.mxu0 0.0
        %703 = vmatpush1.msra.mxu0 0.0
        %704 = vmatprep.subr.mxu0 0.0
        %705 = vmatpush1.msra.mxu0 0.0
        %706 = vmatprep.subr.mxu0 0.0
        %707 = vmatpush1.msra.mxu0 0.0
        %708 = vmatprep.subr.mxu0 0.0
        %709 = vmatpush1.msra.mxu0 0.0
        %710 = vmatprep.subr.mxu0 0.0
        %711 = vmatpush1.msra.mxu0 0.0
        %712 = vmatprep.subr.mxu0 0.0
        %713 = vmatpush1.msra.mxu0 0.0
        %714 = vmatprep.subr.mxu0 0.0
        %715 = vmatpush1.msra.mxu0 0.0
        %716 = vmatprep.subr.mxu0 0.0
        %717 = vmatpush1.msra.mxu0 0.0
        %718 = vmatprep.subr.mxu0 0.0
        %719 = vmatpush1.msra.mxu0 0.0
        %720 = vmatprep.subr.mxu0 0.0
        %721 = vmatpush1.msra.mxu0 0.0
        %722 = vmatprep.subr.mxu0 0.0
        %723 = vmatpush1.msra.mxu0 0.0
        %724 = vmatprep.subr.mxu0 0.0
        %725 = vmatpush1.msra.mxu0 0.0
        %726 = vmatprep.subr.mxu0 0.0
        %727 = vmatpush1.msra.mxu0 0.0
        %728 = vmatprep.subr.mxu0 0.0
        %729 = vmatpush1.msra.mxu0 0.0
        %730 = vmatprep.subr.mxu0 0.0
        %731 = vmatpush1.msra.mxu0 0.0
        %732 = vmatprep.mubr.f32.mxu0 0.0
        %733 = vmatmul.mubr.f32.gmra.mrb[0].mxu0 %v664
        %v734 = vpop.f32.mrb[0].mxu0
        %v735 = vadd.f32 0.0, %v734
        %v736 = vpop.f32.mrb[0].mxu0
        %737 = vmatprep.mubr.f32.mxu0 0.0
        %738 = vmatmul.mubr.f32.gmra.mrb[0].mxu0 %v665
        %v739 = vpop.f32.mrb[0].mxu0
        %v740 = vadd.f32 0.0, %v739
        %v741 = vpop.f32.mrb[0].mxu0
        %742 = vdwg.mxu0
        %v747 = vcombine.low %v645, %v647
        %v748 = vcombine.low %v649, %v651
        %751 = vmatprep.subr.mxu0 0.0
        %752 = vmatpush1.msra.mxu0 %v493
        %753 = vmatprep.subr.mxu0 0.0
        %754 = vmatpush1.msra.mxu0 %v494
        %755 = vmatprep.subr.mxu0 0.0
        %756 = vmatpush1.msra.mxu0 %v495
        %757 = vmatprep.subr.mxu0 0.0
        %758 = vmatpush1.msra.mxu0 %v496
        %759 = vmatprep.subr.mxu0 0.0
        %760 = vmatpush1.msra.mxu0 %v497
        %761 = vmatprep.subr.mxu0 0.0
        %762 = vmatpush1.msra.mxu0 %v498
        %763 = vmatprep.subr.mxu0 0.0
        %764 = vmatpush1.msra.mxu0 %v499
        %765 = vmatprep.subr.mxu0 0.0
        %766 = vmatpush1.msra.mxu0 %v500
        %767 = vmatprep.subr.mxu0 0.0
        %768 = vmatpush1.msra.mxu0 %v501
        %769 = vmatprep.subr.mxu0 0.0
        %770 = vmatpush1.msra.mxu0 %v502
        %771 = vmatprep.subr.mxu0 0.0
        %772 = vmatpush1.msra.mxu0 %v503
        %773 = vmatprep.subr.mxu0 0.0
        %774 = vmatpush1.msra.mxu0 %v504
        %775 = vmatprep.subr.mxu0 0.0
        %776 = vmatpush1.msra.mxu0 %v505
        %777 = vmatprep.subr.mxu0 0.0
        %778 = vmatpush1.msra.mxu0 %v506
        %779 = vmatprep.subr.mxu0 0.0
        %780 = vmatpush1.msra.mxu0 %v507
        %781 = vmatprep.subr.mxu0 0.0
        %782 = vmatpush1.msra.mxu0 %v508
        %783 = vmatprep.subr.mxu0 0.0
        %784 = vmatpush1.msra.mxu0 0.0
        %785 = vmatprep.subr.mxu0 0.0
        %786 = vmatpush1.msra.mxu0 0.0
        %787 = vmatprep.subr.mxu0 0.0
        %788 = vmatpush1.msra.mxu0 0.0
        %789 = vmatprep.subr.mxu0 0.0
        %790 = vmatpush1.msra.mxu0 0.0
        %791 = vmatprep.subr.mxu0 0.0
        %792 = vmatpush1.msra.mxu0 0.0
        %793 = vmatprep.subr.mxu0 0.0
        %794 = vmatpush1.msra.mxu0 0.0
        %795 = vmatprep.subr.mxu0 0.0
        %796 = vmatpush1.msra.mxu0 0.0
        %797 = vmatprep.subr.mxu0 0.0
        %798 = vmatpush1.msra.mxu0 0.0
        %799 = vmatprep.subr.mxu0 0.0
        %800 = vmatpush1.msra.mxu0 0.0
        %801 = vmatprep.subr.mxu0 0.0
        %802 = vmatpush1.msra.mxu0 0.0
        %803 = vmatprep.subr.mxu0 0.0
        %804 = vmatpush1.msra.mxu0 0.0
        %805 = vmatprep.subr.mxu0 0.0
        %806 = vmatpush1.msra.mxu0 0.0
        %807 = vmatprep.subr.mxu0 0.0
        %808 = vmatpush1.msra.mxu0 0.0
        %809 = vmatprep.subr.mxu0 0.0
        %810 = vmatpush1.msra.mxu0 0.0
        %811 = vmatprep.subr.mxu0 0.0
        %812 = vmatpush1.msra.mxu0 0.0
        %813 = vmatprep.subr.mxu0 0.0
        %814 = vmatpush1.msra.mxu0 0.0
        %815 = vmatprep.mubr.f32.mxu0 0.0
        %816 = vmatmul.mubr.f32.gmra.mrb[0].mxu0 %v747
        %v817 = vpop.f32.mrb[0].mxu0
        %v818 = vadd.f32 %v735, %v817
        %v819 = vpop.f32.mrb[0].mxu0
        %820 = vmatprep.mubr.f32.mxu0 0.0
        %821 = vmatmul.mubr.f32.gmra.mrb[0].mxu0 %v748
        %v822 = vpop.f32.mrb[0].mxu0
        %v823 = vadd.f32 %v740, %v822
        %v824 = vpop.f32.mrb[0].mxu0
        %825 = vdwg.mxu0
        %s826 = scalar_lea.vmem [#allocation2], 2
        %v827 = vld [vmem:[%s826] ss:$2 sm:$0xf]
        %s828 = scalar_lea.vmem [#allocation2], 34
        %v829 = vld [vmem:[%s828] ss:$2 sm:$0xf]
        %s830 = scalar_lea.vmem [#allocation2], 66
        %v831 = vld [vmem:[%s830] ss:$2 sm:$0xf]
        %s832 = scalar_lea.vmem [#allocation2], 98
        %v833 = vld [vmem:[%s832] ss:$2 sm:$0xf]
        %v838 = vcombine.low %v827, %v829
        %v839 = vcombine.low %v831, %v833
        %842 = vmatprep.subr.mxu0 0.0
        %843 = vmatpush1.msra.mxu0 %v527
        %844 = vmatprep.subr.mxu0 0.0
        %845 = vmatpush1.msra.mxu0 %v528
        %846 = vmatprep.subr.mxu0 0.0
        %847 = vmatpush1.msra.mxu0 %v529
        %848 = vmatprep.subr.mxu0 0.0
        %849 = vmatpush1.msra.mxu0 %v530
        %850 = vmatprep.subr.mxu0 0.0
        %851 = vmatpush1.msra.mxu0 %v531
        %852 = vmatprep.subr.mxu0 0.0
        %853 = vmatpush1.msra.mxu0 %v532
        %854 = vmatprep.subr.mxu0 0.0
        %855 = vmatpush1.msra.mxu0 %v533
        %856 = vmatprep.subr.mxu0 0.0
        %857 = vmatpush1.msra.mxu0 %v534
        %858 = vmatprep.subr.mxu0 0.0
        %859 = vmatpush1.msra.mxu0 %v535
        %860 = vmatprep.subr.mxu0 0.0
        %861 = vmatpush1.msra.mxu0 %v536
        %862 = vmatprep.subr.mxu0 0.0
        %863 = vmatpush1.msra.mxu0 %v537
        %864 = vmatprep.subr.mxu0 0.0
        %865 = vmatpush1.msra.mxu0 %v538
        %866 = vmatprep.subr.mxu0 0.0
        %867 = vmatpush1.msra.mxu0 %v539
        %868 = vmatprep.subr.mxu0 0.0
        %869 = vmatpush1.msra.mxu0 %v540
        %870 = vmatprep.subr.mxu0 0.0
        %871 = vmatpush1.msra.mxu0 %v541
        %872 = vmatprep.subr.mxu0 0.0
        %873 = vmatpush1.msra.mxu0 %v542
        %874 = vmatprep.subr.mxu0 0.0
        %875 = vmatpush1.msra.mxu0 0.0
        %876 = vmatprep.subr.mxu0 0.0
        %877 = vmatpush1.msra.mxu0 0.0
        %878 = vmatprep.subr.mxu0 0.0
        %879 = vmatpush1.msra.mxu0 0.0
        %880 = vmatprep.subr.mxu0 0.0
        %881 = vmatpush1.msra.mxu0 0.0
        %882 = vmatprep.subr.mxu0 0.0
        %883 = vmatpush1.msra.mxu0 0.0
        %884 = vmatprep.subr.mxu0 0.0
        %885 = vmatpush1.msra.mxu0 0.0
        %886 = vmatprep.subr.mxu0 0.0
        %887 = vmatpush1.msra.mxu0 0.0
        %888 = vmatprep.subr.mxu0 0.0
        %889 = vmatpush1.msra.mxu0 0.0
        %890 = vmatprep.subr.mxu0 0.0
        %891 = vmatpush1.msra.mxu0 0.0
        %892 = vmatprep.subr.mxu0 0.0
        %893 = vmatpush1.msra.mxu0 0.0
        %894 = vmatprep.subr.mxu0 0.0
        %895 = vmatpush1.msra.mxu0 0.0
        %896 = vmatprep.subr.mxu0 0.0
        %897 = vmatpush1.msra.mxu0 0.0
        %898 = vmatprep.subr.mxu0 0.0
        %899 = vmatpush1.msra.mxu0 0.0
        %900 = vmatprep.subr.mxu0 0.0
        %901 = vmatpush1.msra.mxu0 0.0
        %902 = vmatprep.subr.mxu0 0.0
        %903 = vmatpush1.msra.mxu0 0.0
        %904 = vmatprep.subr.mxu0 0.0
        %905 = vmatpush1.msra.mxu0 0.0
        %906 = vmatprep.mubr.f32.mxu0 0.0
        %907 = vmatmul.mubr.f32.gmra.mrb[0].mxu0 %v838
        %v908 = vpop.f32.mrb[0].mxu0
        %v909 = vadd.f32 0.0, %v908
        %v910 = vpop.f32.mrb[0].mxu0
        %911 = vmatprep.mubr.f32.mxu0 0.0
        %912 = vmatmul.mubr.f32.gmra.mrb[0].mxu0 %v839
        %v913 = vpop.f32.mrb[0].mxu0
        %v914 = vadd.f32 0.0, %v913
        %v915 = vpop.f32.mrb[0].mxu0
        %916 = vdwg.mxu0
        %v917 = vadd.f32 %v818, %v909
        %v918 = vadd.f32 %v823, %v914
        %v919 = vld [vmem:[%s437] ss:$2 sm:$0xf]
        %s920 = scalar_lea.vmem %s437, 32 [#allocation2]
        %v921 = vld [vmem:[%s920] ss:$2 sm:$0xf]
        %s922 = scalar_lea.vmem %s437, 64 [#allocation2]
        %v923 = vld [vmem:[%s922] ss:$2 sm:$0xf]
        %s924 = scalar_lea.vmem %s437, 96 [#allocation2]
        %v925 = vld [vmem:[%s924] ss:$2 sm:$0xf]
        %v930 = vcombine.low %v919, %v921
        %v931 = vcombine.low %v923, %v925
        %934 = vmatprep.subr.mxu0 0.0
        %935 = vmatpush1.msra.mxu0 %v544
        %936 = vmatprep.subr.mxu0 0.0
        %937 = vmatpush1.msra.mxu0 %v545
        %938 = vmatprep.subr.mxu0 0.0
        %939 = vmatpush1.msra.mxu0 %v546
        %940 = vmatprep.subr.mxu0 0.0
        %941 = vmatpush1.msra.mxu0 %v547
        %942 = vmatprep.subr.mxu0 0.0
        %943 = vmatpush1.msra.mxu0 %v548
        %944 = vmatprep.subr.mxu0 0.0
        %945 = vmatpush1.msra.mxu0 %v549
        %946 = vmatprep.subr.mxu0 0.0
        %947 = vmatpush1.msra.mxu0 %v550
        %948 = vmatprep.subr.mxu0 0.0
        %949 = vmatpush1.msra.mxu0 %v551
        %950 = vmatprep.subr.mxu0 0.0
        %951 = vmatpush1.msra.mxu0 %v552
        %952 = vmatprep.subr.mxu0 0.0
        %953 = vmatpush1.msra.mxu0 %v553
        %954 = vmatprep.subr.mxu0 0.0
        %955 = vmatpush1.msra.mxu0 %v554
        %956 = vmatprep.subr.mxu0 0.0
        %957 = vmatpush1.msra.mxu0 %v555
        %958 = vmatprep.subr.mxu0 0.0
        %959 = vmatpush1.msra.mxu0 %v556
        %960 = vmatprep.subr.mxu0 0.0
        %961 = vmatpush1.msra.mxu0 %v557
        %962 = vmatprep.subr.mxu0 0.0
        %963 = vmatpush1.msra.mxu0 %v558
        %964 = vmatprep.subr.mxu0 0.0
        %965 = vmatpush1.msra.mxu0 %v559
        %966 = vmatprep.subr.mxu0 0.0
        %967 = vmatpush1.msra.mxu0 0.0
        %968 = vmatprep.subr.mxu0 0.0
        %969 = vmatpush1.msra.mxu0 0.0
        %970 = vmatprep.subr.mxu0 0.0
        %971 = vmatpush1.msra.mxu0 0.0
        %972 = vmatprep.subr.mxu0 0.0
        %973 = vmatpush1.msra.mxu0 0.0
        %974 = vmatprep.subr.mxu0 0.0
        %975 = vmatpush1.msra.mxu0 0.0
        %976 = vmatprep.subr.mxu0 0.0
        %977 = vmatpush1.msra.mxu0 0.0
        %978 = vmatprep.subr.mxu0 0.0
        %979 = vmatpush1.msra.mxu0 0.0
        %980 = vmatprep.subr.mxu0 0.0
        %981 = vmatpush1.msra.mxu0 0.0
        %982 = vmatprep.subr.mxu0 0.0
        %983 = vmatpush1.msra.mxu0 0.0
        %984 = vmatprep.subr.mxu0 0.0
        %985 = vmatpush1.msra.mxu0 0.0
        %986 = vmatprep.subr.mxu0 0.0
        %987 = vmatpush1.msra.mxu0 0.0
        %988 = vmatprep.subr.mxu0 0.0
        %989 = vmatpush1.msra.mxu0 0.0
        %990 = vmatprep.subr.mxu0 0.0
        %991 = vmatpush1.msra.mxu0 0.0
        %992 = vmatprep.subr.mxu0 0.0
        %993 = vmatpush1.msra.mxu0 0.0
        %994 = vmatprep.subr.mxu0 0.0
        %995 = vmatpush1.msra.mxu0 0.0
        %996 = vmatprep.subr.mxu0 0.0
        %997 = vmatpush1.msra.mxu0 0.0
        %998 = vmatprep.mubr.f32.mxu0 0.0
        %999 = vmatmul.mubr.f32.gmra.mrb[0].mxu0 %v930
        %v1000 = vpop.f32.mrb[0].mxu0
        %v1001 = vadd.f32 0.0, %v1000
        %v1002 = vpop.f32.mrb[0].mxu0
        %1003 = vmatprep.mubr.f32.mxu0 0.0
        %1004 = vmatmul.mubr.f32.gmra.mrb[0].mxu0 %v931
        %v1005 = vpop.f32.mrb[0].mxu0
        %v1006 = vadd.f32 0.0, %v1005
        %v1007 = vpop.f32.mrb[0].mxu0
        %1008 = vdwg.mxu0
        %v1009 = vadd.f32 %v917, %v1001
        %v1010 = vadd.f32 %v918, %v1006
        %s1011 = scalar_lea.vmem %s437, 1 [#allocation2]
        %v1012 = vld [vmem:[%s1011] ss:$2 sm:$0xf]
        %s1013 = scalar_lea.vmem %s437, 33 [#allocation2]
        %v1014 = vld [vmem:[%s1013] ss:$2 sm:$0xf]
        %s1015 = scalar_lea.vmem %s437, 65 [#allocation2]
        %v1016 = vld [vmem:[%s1015] ss:$2 sm:$0xf]
        %s1017 = scalar_lea.vmem %s437, 97 [#allocation2]
        %v1018 = vld [vmem:[%s1017] ss:$2 sm:$0xf]
        %v1023 = vcombine.low %v1012, %v1014
        %v1024 = vcombine.low %v1016, %v1018
        %1027 = vmatprep.subr.mxu0 0.0
        %1028 = vmatpush1.msra.mxu0 %v561
        %1029 = vmatprep.subr.mxu0 0.0
        %1030 = vmatpush1.msra.mxu0 %v562
        %1031 = vmatprep.subr.mxu0 0.0
        %1032 = vmatpush1.msra.mxu0 %v563
        %1033 = vmatprep.subr.mxu0 0.0
        %1034 = vmatpush1.msra.mxu0 %v564
        %1035 = vmatprep.subr.mxu0 0.0
        %1036 = vmatpush1.msra.mxu0 %v565
        %1037 = vmatprep.subr.mxu0 0.0
        %1038 = vmatpush1.msra.mxu0 %v566
        %1039 = vmatprep.subr.mxu0 0.0
        %1040 = vmatpush1.msra.mxu0 %v567
        %1041 = vmatprep.subr.mxu0 0.0
        %1042 = vmatpush1.msra.mxu0 %v568
        %1043 = vmatprep.subr.mxu0 0.0
        %1044 = vmatpush1.msra.mxu0 %v569
        %1045 = vmatprep.subr.mxu0 0.0
        %1046 = vmatpush1.msra.mxu0 %v570
        %1047 = vmatprep.subr.mxu0 0.0
        %1048 = vmatpush1.msra.mxu0 %v571
        %1049 = vmatprep.subr.mxu0 0.0
        %1050 = vmatpush1.msra.mxu0 %v572
        %1051 = vmatprep.subr.mxu0 0.0
        %1052 = vmatpush1.msra.mxu0 %v573
        %1053 = vmatprep.subr.mxu0 0.0
        %1054 = vmatpush1.msra.mxu0 %v574
        %1055 = vmatprep.subr.mxu0 0.0
        %1056 = vmatpush1.msra.mxu0 %v575
        %1057 = vmatprep.subr.mxu0 0.0
        %1058 = vmatpush1.msra.mxu0 %v576
        %1059 = vmatprep.subr.mxu0 0.0
        %1060 = vmatpush1.msra.mxu0 0.0
        %1061 = vmatprep.subr.mxu0 0.0
        %1062 = vmatpush1.msra.mxu0 0.0
        %1063 = vmatprep.subr.mxu0 0.0
        %1064 = vmatpush1.msra.mxu0 0.0
        %1065 = vmatprep.subr.mxu0 0.0
        %1066 = vmatpush1.msra.mxu0 0.0
        %1067 = vmatprep.subr.mxu0 0.0
        %1068 = vmatpush1.msra.mxu0 0.0
        %1069 = vmatprep.subr.mxu0 0.0
        %1070 = vmatpush1.msra.mxu0 0.0
        %1071 = vmatprep.subr.mxu0 0.0
        %1072 = vmatpush1.msra.mxu0 0.0
        %1073 = vmatprep.subr.mxu0 0.0
        %1074 = vmatpush1.msra.mxu0 0.0
        %1075 = vmatprep.subr.mxu0 0.0
        %1076 = vmatpush1.msra.mxu0 0.0
        %1077 = vmatprep.subr.mxu0 0.0
        %1078 = vmatpush1.msra.mxu0 0.0
        %1079 = vmatprep.subr.mxu0 0.0
        %1080 = vmatpush1.msra.mxu0 0.0
        %1081 = vmatprep.subr.mxu0 0.0
        %1082 = vmatpush1.msra.mxu0 0.0
        %1083 = vmatprep.subr.mxu0 0.0
        %1084 = vmatpush1.msra.mxu0 0.0
        %1085 = vmatprep.subr.mxu0 0.0
        %1086 = vmatpush1.msra.mxu0 0.0
        %1087 = vmatprep.subr.mxu0 0.0
        %1088 = vmatpush1.msra.mxu0 0.0
        %1089 = vmatprep.subr.mxu0 0.0
        %1090 = vmatpush1.msra.mxu0 0.0
        %1091 = vmatprep.mubr.f32.mxu0 0.0
        %1092 = vmatmul.mubr.f32.gmra.mrb[0].mxu0 %v1023
        %v1093 = vpop.f32.mrb[0].mxu0
        %v1094 = vadd.f32 0.0, %v1093
        %v1095 = vpop.f32.mrb[0].mxu0
        %1096 = vmatprep.mubr.f32.mxu0 0.0
        %1097 = vmatmul.mubr.f32.gmra.mrb[0].mxu0 %v1024
        %v1098 = vpop.f32.mrb[0].mxu0
        %v1099 = vadd.f32 0.0, %v1098
        %v1100 = vpop.f32.mrb[0].mxu0
        %1101 = vdwg.mxu0
        %v1102 = vadd.f32 %v1009, %v1094
        %v1103 = vadd.f32 %v1010, %v1099
        %s1104 = scalar_lea.vmem %s437, 2 [#allocation2]
        %v1105 = vld [vmem:[%s1104] ss:$2 sm:$0xf]
        %s1106 = scalar_lea.vmem %s437, 34 [#allocation2]
        %v1107 = vld [vmem:[%s1106] ss:$2 sm:$0xf]
        %s1108 = scalar_lea.vmem %s437, 66 [#allocation2]
        %v1109 = vld [vmem:[%s1108] ss:$2 sm:$0xf]
        %s1110 = scalar_lea.vmem %s437, 98 [#allocation2]
        %v1111 = vld [vmem:[%s1110] ss:$2 sm:$0xf]
        %v1116 = vcombine.low %v1105, %v1107
        %v1117 = vcombine.low %v1109, %v1111
        %1120 = vmatprep.subr.mxu0 0.0
        %1121 = vmatpush1.msra.mxu0 %v578
        %1122 = vmatprep.subr.mxu0 0.0
        %1123 = vmatpush1.msra.mxu0 %v579
        %1124 = vmatprep.subr.mxu0 0.0
        %1125 = vmatpush1.msra.mxu0 %v580
        %1126 = vmatprep.subr.mxu0 0.0
        %1127 = vmatpush1.msra.mxu0 %v581
        %1128 = vmatprep.subr.mxu0 0.0
        %1129 = vmatpush1.msra.mxu0 %v582
        %1130 = vmatprep.subr.mxu0 0.0
        %1131 = vmatpush1.msra.mxu0 %v583
        %1132 = vmatprep.subr.mxu0 0.0
        %1133 = vmatpush1.msra.mxu0 %v584
        %1134 = vmatprep.subr.mxu0 0.0
        %1135 = vmatpush1.msra.mxu0 %v585
        %1136 = vmatprep.subr.mxu0 0.0
        %1137 = vmatpush1.msra.mxu0 %v586
        %1138 = vmatprep.subr.mxu0 0.0
        %1139 = vmatpush1.msra.mxu0 %v587
        %1140 = vmatprep.subr.mxu0 0.0
        %1141 = vmatpush1.msra.mxu0 %v588
        %1142 = vmatprep.subr.mxu0 0.0
        %1143 = vmatpush1.msra.mxu0 %v589
        %1144 = vmatprep.subr.mxu0 0.0
        %1145 = vmatpush1.msra.mxu0 %v590
        %1146 = vmatprep.subr.mxu0 0.0
        %1147 = vmatpush1.msra.mxu0 %v591
        %1148 = vmatprep.subr.mxu0 0.0
        %1149 = vmatpush1.msra.mxu0 %v592
        %1150 = vmatprep.subr.mxu0 0.0
        %1151 = vmatpush1.msra.mxu0 %v593
        %1152 = vmatprep.subr.mxu0 0.0
        %1153 = vmatpush1.msra.mxu0 0.0
        %1154 = vmatprep.subr.mxu0 0.0
        %1155 = vmatpush1.msra.mxu0 0.0
        %1156 = vmatprep.subr.mxu0 0.0
        %1157 = vmatpush1.msra.mxu0 0.0
        %1158 = vmatprep.subr.mxu0 0.0
        %1159 = vmatpush1.msra.mxu0 0.0
        %1160 = vmatprep.subr.mxu0 0.0
        %1161 = vmatpush1.msra.mxu0 0.0
        %1162 = vmatprep.subr.mxu0 0.0
        %1163 = vmatpush1.msra.mxu0 0.0
        %1164 = vmatprep.subr.mxu0 0.0
        %1165 = vmatpush1.msra.mxu0 0.0
        %1166 = vmatprep.subr.mxu0 0.0
        %1167 = vmatpush1.msra.mxu0 0.0
        %1168 = vmatprep.subr.mxu0 0.0
        %1169 = vmatpush1.msra.mxu0 0.0
        %1170 = vmatprep.subr.mxu0 0.0
        %1171 = vmatpush1.msra.mxu0 0.0
        %1172 = vmatprep.subr.mxu0 0.0
        %1173 = vmatpush1.msra.mxu0 0.0
        %1174 = vmatprep.subr.mxu0 0.0
        %1175 = vmatpush1.msra.mxu0 0.0
        %1176 = vmatprep.subr.mxu0 0.0
        %1177 = vmatpush1.msra.mxu0 0.0
        %1178 = vmatprep.subr.mxu0 0.0
        %1179 = vmatpush1.msra.mxu0 0.0
        %1180 = vmatprep.subr.mxu0 0.0
        %1181 = vmatpush1.msra.mxu0 0.0
        %1182 = vmatprep.subr.mxu0 0.0
        %1183 = vmatpush1.msra.mxu0 0.0
        %1184 = vmatprep.mubr.f32.mxu0 0.0
        %1185 = vmatmul.mubr.f32.gmra.mrb[0].mxu0 %v1116
        %v1186 = vpop.f32.mrb[0].mxu0
        %v1187 = vadd.f32 0.0, %v1186
        %v1188 = vpop.f32.mrb[0].mxu0
        %1189 = vmatprep.mubr.f32.mxu0 0.0
        %1190 = vmatmul.mubr.f32.gmra.mrb[0].mxu0 %v1117
        %v1191 = vpop.f32.mrb[0].mxu0
        %v1192 = vadd.f32 0.0, %v1191
        %v1193 = vpop.f32.mrb[0].mxu0
        %1194 = vdwg.mxu0
        %v1195 = vadd.f32 %v1102, %v1187
        %v1196 = vadd.f32 %v1103, %v1192
        %s1197 = scalar_lea.vmem [#allocation2], 32
        %v1198 = vld [vmem:[%s1197] ss:$2 sm:$0xf]
        %s1199 = scalar_lea.vmem %s1197, 32 [#allocation2]
        %v1200 = vld [vmem:[%s1199] ss:$2 sm:$0xf]
        %s1201 = scalar_lea.vmem %s1197, 64 [#allocation2]
        %v1202 = vld [vmem:[%s1201] ss:$2 sm:$0xf]
        %s1203 = scalar_lea.vmem %s1197, 96 [#allocation2]
        %v1204 = vld [vmem:[%s1203] ss:$2 sm:$0xf]
        %v1209 = vcombine.low %v1198, %v1200
        %v1210 = vcombine.low %v1202, %v1204
        %1213 = vmatprep.subr.mxu0 0.0
        %1214 = vmatpush1.msra.mxu0 %v595
        %1215 = vmatprep.subr.mxu0 0.0
        %1216 = vmatpush1.msra.mxu0 %v596
        %1217 = vmatprep.subr.mxu0 0.0
        %1218 = vmatpush1.msra.mxu0 %v597
        %1219 = vmatprep.subr.mxu0 0.0
        %1220 = vmatpush1.msra.mxu0 %v598
        %1221 = vmatprep.subr.mxu0 0.0
        %1222 = vmatpush1.msra.mxu0 %v599
        %1223 = vmatprep.subr.mxu0 0.0
        %1224 = vmatpush1.msra.mxu0 %v600
        %1225 = vmatprep.subr.mxu0 0.0
        %1226 = vmatpush1.msra.mxu0 %v601
        %1227 = vmatprep.subr.mxu0 0.0
        %1228 = vmatpush1.msra.mxu0 %v602
        %1229 = vmatprep.subr.mxu0 0.0
        %1230 = vmatpush1.msra.mxu0 %v603
        %1231 = vmatprep.subr.mxu0 0.0
        %1232 = vmatpush1.msra.mxu0 %v604
        %1233 = vmatprep.subr.mxu0 0.0
        %1234 = vmatpush1.msra.mxu0 %v605
        %1235 = vmatprep.subr.mxu0 0.0
        %1236 = vmatpush1.msra.mxu0 %v606
        %1237 = vmatprep.subr.mxu0 0.0
        %1238 = vmatpush1.msra.mxu0 %v607
        %1239 = vmatprep.subr.mxu0 0.0
        %1240 = vmatpush1.msra.mxu0 %v608
        %1241 = vmatprep.subr.mxu0 0.0
        %1242 = vmatpush1.msra.mxu0 %v609
        %1243 = vmatprep.subr.mxu0 0.0
        %1244 = vmatpush1.msra.mxu0 %v610
        %1245 = vmatprep.subr.mxu0 0.0
        %1246 = vmatpush1.msra.mxu0 0.0
        %1247 = vmatprep.subr.mxu0 0.0
        %1248 = vmatpush1.msra.mxu0 0.0
        %1249 = vmatprep.subr.mxu0 0.0
        %1250 = vmatpush1.msra.mxu0 0.0
        %1251 = vmatprep.subr.mxu0 0.0
        %1252 = vmatpush1.msra.mxu0 0.0
        %1253 = vmatprep.subr.mxu0 0.0
        %1254 = vmatpush1.msra.mxu0 0.0
        %1255 = vmatprep.subr.mxu0 0.0
        %1256 = vmatpush1.msra.mxu0 0.0
        %1257 = vmatprep.subr.mxu0 0.0
        %1258 = vmatpush1.msra.mxu0 0.0
        %1259 = vmatprep.subr.mxu0 0.0
        %1260 = vmatpush1.msra.mxu0 0.0
        %1261 = vmatprep.subr.mxu0 0.0
        %1262 = vmatpush1.msra.mxu0 0.0
        %1263 = vmatprep.subr.mxu0 0.0
        %1264 = vmatpush1.msra.mxu0 0.0
        %1265 = vmatprep.subr.mxu0 0.0
        %1266 = vmatpush1.msra.mxu0 0.0
        %1267 = vmatprep.subr.mxu0 0.0
        %1268 = vmatpush1.msra.mxu0 0.0
        %1269 = vmatprep.subr.mxu0 0.0
        %1270 = vmatpush1.msra.mxu0 0.0
        %1271 = vmatprep.subr.mxu0 0.0
        %1272 = vmatpush1.msra.mxu0 0.0
        %1273 = vmatprep.subr.mxu0 0.0
        %1274 = vmatpush1.msra.mxu0 0.0
        %1275 = vmatprep.subr.mxu0 0.0
        %1276 = vmatpush1.msra.mxu0 0.0
        %1277 = vmatprep.mubr.f32.mxu0 0.0
        %1278 = vmatmul.mubr.f32.gmra.mrb[0].mxu0 %v1209
        %v1279 = vpop.f32.mrb[0].mxu0
        %v1280 = vadd.f32 0.0, %v1279
        %v1281 = vpop.f32.mrb[0].mxu0
        %1282 = vmatprep.mubr.f32.mxu0 0.0
        %1283 = vmatmul.mubr.f32.gmra.mrb[0].mxu0 %v1210
        %v1284 = vpop.f32.mrb[0].mxu0
        %v1285 = vadd.f32 0.0, %v1284
        %v1286 = vpop.f32.mrb[0].mxu0
        %1287 = vdwg.mxu0
        %v1288 = vadd.f32 %v1195, %v1280
        %v1289 = vadd.f32 %v1196, %v1285
        %s1290 = scalar_lea.vmem %s1197, 1 [#allocation2]
        %v1291 = vld [vmem:[%s1290] ss:$2 sm:$0xf]
        %s1292 = scalar_lea.vmem %s1197, 33 [#allocation2]
        %v1293 = vld [vmem:[%s1292] ss:$2 sm:$0xf]
        %s1294 = scalar_lea.vmem %s1197, 65 [#allocation2]
        %v1295 = vld [vmem:[%s1294] ss:$2 sm:$0xf]
        %s1296 = scalar_lea.vmem %s1197, 97 [#allocation2]
        %v1297 = vld [vmem:[%s1296] ss:$2 sm:$0xf]
        %v1302 = vcombine.low %v1291, %v1293
        %v1303 = vcombine.low %v1295, %v1297
        %1306 = vmatprep.subr.mxu0 0.0
        %1307 = vmatpush1.msra.mxu0 %v612
        %1308 = vmatprep.subr.mxu0 0.0
        %1309 = vmatpush1.msra.mxu0 %v613
        %1310 = vmatprep.subr.mxu0 0.0
        %1311 = vmatpush1.msra.mxu0 %v614
        %1312 = vmatprep.subr.mxu0 0.0
        %1313 = vmatpush1.msra.mxu0 %v615
        %1314 = vmatprep.subr.mxu0 0.0
        %1315 = vmatpush1.msra.mxu0 %v616
        %1316 = vmatprep.subr.mxu0 0.0
        %1317 = vmatpush1.msra.mxu0 %v617
        %1318 = vmatprep.subr.mxu0 0.0
        %1319 = vmatpush1.msra.mxu0 %v618
        %1320 = vmatprep.subr.mxu0 0.0
        %1321 = vmatpush1.msra.mxu0 %v619
        %1322 = vmatprep.subr.mxu0 0.0
        %1323 = vmatpush1.msra.mxu0 %v620
        %1324 = vmatprep.subr.mxu0 0.0
        %1325 = vmatpush1.msra.mxu0 %v621
        %1326 = vmatprep.subr.mxu0 0.0
        %1327 = vmatpush1.msra.mxu0 %v622
        %1328 = vmatprep.subr.mxu0 0.0
        %1329 = vmatpush1.msra.mxu0 %v623
        %1330 = vmatprep.subr.mxu0 0.0
        %1331 = vmatpush1.msra.mxu0 %v624
        %1332 = vmatprep.subr.mxu0 0.0
        %1333 = vmatpush1.msra.mxu0 %v625
        %1334 = vmatprep.subr.mxu0 0.0
        %1335 = vmatpush1.msra.mxu0 %v626
        %1336 = vmatprep.subr.mxu0 0.0
        %1337 = vmatpush1.msra.mxu0 %v627
        %1338 = vmatprep.subr.mxu0 0.0
        %1339 = vmatpush1.msra.mxu0 0.0
        %1340 = vmatprep.subr.mxu0 0.0
        %1341 = vmatpush1.msra.mxu0 0.0
        %1342 = vmatprep.subr.mxu0 0.0
        %1343 = vmatpush1.msra.mxu0 0.0
        %1344 = vmatprep.subr.mxu0 0.0
        %1345 = vmatpush1.msra.mxu0 0.0
        %1346 = vmatprep.subr.mxu0 0.0
        %1347 = vmatpush1.msra.mxu0 0.0
        %1348 = vmatprep.subr.mxu0 0.0
        %1349 = vmatpush1.msra.mxu0 0.0
        %1350 = vmatprep.subr.mxu0 0.0
        %1351 = vmatpush1.msra.mxu0 0.0
        %1352 = vmatprep.subr.mxu0 0.0
        %1353 = vmatpush1.msra.mxu0 0.0
        %1354 = vmatprep.subr.mxu0 0.0
        %1355 = vmatpush1.msra.mxu0 0.0
        %1356 = vmatprep.subr.mxu0 0.0
        %1357 = vmatpush1.msra.mxu0 0.0
        %1358 = vmatprep.subr.mxu0 0.0
        %1359 = vmatpush1.msra.mxu0 0.0
        %1360 = vmatprep.subr.mxu0 0.0
        %1361 = vmatpush1.msra.mxu0 0.0
        %1362 = vmatprep.subr.mxu0 0.0
        %1363 = vmatpush1.msra.mxu0 0.0
        %1364 = vmatprep.subr.mxu0 0.0
        %1365 = vmatpush1.msra.mxu0 0.0
        %1366 = vmatprep.subr.mxu0 0.0
        %1367 = vmatpush1.msra.mxu0 0.0
        %1368 = vmatprep.subr.mxu0 0.0
        %1369 = vmatpush1.msra.mxu0 0.0
        %1370 = vmatprep.mubr.f32.mxu0 0.0
        %1371 = vmatmul.mubr.f32.gmra.mrb[0].mxu0 %v1302
        %v1372 = vpop.f32.mrb[0].mxu0
        %v1373 = vadd.f32 0.0, %v1372
        %v1374 = vpop.f32.mrb[0].mxu0
        %1375 = vmatprep.mubr.f32.mxu0 0.0
        %1376 = vmatmul.mubr.f32.gmra.mrb[0].mxu0 %v1303
        %v1377 = vpop.f32.mrb[0].mxu0
        %v1378 = vadd.f32 0.0, %v1377
        %v1379 = vpop.f32.mrb[0].mxu0
        %1380 = vdwg.mxu0
        %v1381 = vadd.f32 %v1288, %v1373
        %v1382 = vadd.f32 %v1289, %v1378
        %s1383 = scalar_lea.vmem %s1197, 2 [#allocation2]
        %v1384 = vld [vmem:[%s1383] ss:$2 sm:$0xf]
        %s1385 = scalar_lea.vmem %s1197, 34 [#allocation2]
        %v1386 = vld [vmem:[%s1385] ss:$2 sm:$0xf]
        %s1387 = scalar_lea.vmem %s1197, 66 [#allocation2]
        %v1388 = vld [vmem:[%s1387] ss:$2 sm:$0xf]
        %s1389 = scalar_lea.vmem %s1197, 98 [#allocation2]
        %v1390 = vld [vmem:[%s1389] ss:$2 sm:$0xf]
        %v1395 = vcombine.low %v1384, %v1386
        %v1396 = vcombine.low %v1388, %v1390
        %1399 = vmatprep.subr.mxu0 0.0
        %1400 = vmatpush1.msra.mxu0 %v629
        %1401 = vmatprep.subr.mxu0 0.0
        %1402 = vmatpush1.msra.mxu0 %v630
        %1403 = vmatprep.subr.mxu0 0.0
        %1404 = vmatpush1.msra.mxu0 %v631
        %1405 = vmatprep.subr.mxu0 0.0
        %1406 = vmatpush1.msra.mxu0 %v632
        %1407 = vmatprep.subr.mxu0 0.0
        %1408 = vmatpush1.msra.mxu0 %v633
        %1409 = vmatprep.subr.mxu0 0.0
        %1410 = vmatpush1.msra.mxu0 %v634
        %1411 = vmatprep.subr.mxu0 0.0
        %1412 = vmatpush1.msra.mxu0 %v635
        %1413 = vmatprep.subr.mxu0 0.0
        %1414 = vmatpush1.msra.mxu0 %v636
        %1415 = vmatprep.subr.mxu0 0.0
        %1416 = vmatpush1.msra.mxu0 %v637
        %1417 = vmatprep.subr.mxu0 0.0
        %1418 = vmatpush1.msra.mxu0 %v638
        %1419 = vmatprep.subr.mxu0 0.0
        %1420 = vmatpush1.msra.mxu0 %v639
        %1421 = vmatprep.subr.mxu0 0.0
        %1422 = vmatpush1.msra.mxu0 %v640
        %1423 = vmatprep.subr.mxu0 0.0
        %1424 = vmatpush1.msra.mxu0 %v641
        %1425 = vmatprep.subr.mxu0 0.0
        %1426 = vmatpush1.msra.mxu0 %v642
        %1427 = vmatprep.subr.mxu0 0.0
        %1428 = vmatpush1.msra.mxu0 %v643
        %1429 = vmatprep.subr.mxu0 0.0
        %1430 = vmatpush1.msra.mxu0 %v644
        %1431 = vmatprep.subr.mxu0 0.0
        %1432 = vmatpush1.msra.mxu0 0.0
        %1433 = vmatprep.subr.mxu0 0.0
        %1434 = vmatpush1.msra.mxu0 0.0
        %1435 = vmatprep.subr.mxu0 0.0
        %1436 = vmatpush1.msra.mxu0 0.0
        %1437 = vmatprep.subr.mxu0 0.0
        %1438 = vmatpush1.msra.mxu0 0.0
        %1439 = vmatprep.subr.mxu0 0.0
        %1440 = vmatpush1.msra.mxu0 0.0
        %1441 = vmatprep.subr.mxu0 0.0
        %1442 = vmatpush1.msra.mxu0 0.0
        %1443 = vmatprep.subr.mxu0 0.0
        %1444 = vmatpush1.msra.mxu0 0.0
        %1445 = vmatprep.subr.mxu0 0.0
        %1446 = vmatpush1.msra.mxu0 0.0
        %1447 = vmatprep.subr.mxu0 0.0
        %1448 = vmatpush1.msra.mxu0 0.0
        %1449 = vmatprep.subr.mxu0 0.0
        %1450 = vmatpush1.msra.mxu0 0.0
        %1451 = vmatprep.subr.mxu0 0.0
        %1452 = vmatpush1.msra.mxu0 0.0
        %1453 = vmatprep.subr.mxu0 0.0
        %1454 = vmatpush1.msra.mxu0 0.0
        %1455 = vmatprep.subr.mxu0 0.0
        %1456 = vmatpush1.msra.mxu0 0.0
        %1457 = vmatprep.subr.mxu0 0.0
        %1458 = vmatpush1.msra.mxu0 0.0
        %1459 = vmatprep.subr.mxu0 0.0
        %1460 = vmatpush1.msra.mxu0 0.0
        %1461 = vmatprep.subr.mxu0 0.0
        %1462 = vmatpush1.msra.mxu0 0.0
        %1463 = vmatprep.mubr.f32.mxu0 0.0
        %1464 = vmatmul.mubr.f32.gmra.mrb[0].mxu0 %v1395
        %v1465 = vpop.f32.mrb[0].mxu0
        %v1466 = vadd.f32 0.0, %v1465
        %v1467 = vpop.f32.mrb[0].mxu0
        %1468 = vmatprep.mubr.f32.mxu0 0.0
        %1469 = vmatmul.mubr.f32.gmra.mrb[0].mxu0 %v1396
        %v1470 = vpop.f32.mrb[0].mxu0
        %v1471 = vadd.f32 0.0, %v1470
        %v1472 = vpop.f32.mrb[0].mxu0
        %1473 = vdwg.mxu0
        %v1474 = vadd.f32 %v1381, %v1466
        %v1475 = vadd.f32 %v1382, %v1471
        %v1476 = vadd.f32 %v1474, %v1475
        %v1477 = vrot.slane %v1476, 4
        %v1478 = vadd.f32 %v1476, %v1477
        %v1479 = vrot.slane %v1478, 2
        %v1480 = vadd.f32 %v1478, %v1479
        %v1481 = vrot.slane %v1480, 1
        %v1482 = vadd.f32 %v1480, %v1481
        %v1483 = vadd.f32 %v1482, 0.0
        %v1484 = vmul.f32 %v1474, %v1474
        %v1485 = vmul.f32 %v1475, %v1475
        %v1486 = vadd.f32 %v1484, %v1485
        %v1487 = vrot.slane %v1486, 4
        %v1488 = vadd.f32 %v1486, %v1487
        %v1489 = vrot.slane %v1488, 2
        %v1490 = vadd.f32 %v1488, %v1489
        %v1491 = vrot.slane %v1490, 1
        %v1492 = vadd.f32 %v1490, %v1491
        %v1493 = vadd.f32 %v1492, 0.0
        %v1496 = vcombine.high %v1474, %v1474
        %v1497 = vcombine.high %v1475, %v1475
        %s1500 = scalar_lea.vmem [#allocation3], 8
        %1501 = vst [vmem:[%s1500 + $0x1] sm:$0xf] %v1474
        %1502 = vst [vmem:[%s1500 + $0x9] sm:$0xf] %v1496
        %1503 = vst [vmem:[%s1500 + $0x11] sm:$0xf] %v1475
        %1504 = vst [vmem:[%s1500 + $0x19] sm:$0xf] %v1497
        %v1505 = vmul.f32 %v1483, 0.0625
        %v1506 = vmul.f32 %v1493, 0.0625
        %v1507 = vmul.f32 %v1505, %v1505
        %v1508 = vsub.f32 %v1506, %v1507
        %v1509 = vmax.f32 %v1508, 0.0
        %v1510 = vadd.f32 %v1509, 1e-05
        %v1511 = vrsqrt.pop %v1510
        %v1512 = vld [vmem:[%s1500 + $0x1] sm:$0xf]
        %v1513 = vld [vmem:[%s1500 + $0x9] sm:$0xf]
        %v1514 = vld [vmem:[%s1500 + $0x11] sm:$0xf]
        %v1515 = vld [vmem:[%s1500 + $0x19] sm:$0xf]
        %v1516 = vsub.f32 %v1512, %v1505
        %v1517 = vsub.f32 %v1513, %v1505
        %v1518 = vsub.f32 %v1514, %v1505
        %v1519 = vsub.f32 %v1515, %v1505
        %v1520 = vmul.f32 %v1516, %v1511
        %v1521 = vmul.f32 %v1517, %v1511
        %v1522 = vmul.f32 %v1518, %v1511
        %v1523 = vmul.f32 %v1519, %v1511
        %v1524 = vmax.f32 %v1520, 0.0
        %v1525 = vmax.f32 %v1521, 0.0
        %v1526 = vmax.f32 %v1522, 0.0
        %v1527 = vmax.f32 %v1523, 0.0
        %1528 = vst [vmem:[%s217] sm:$0xf] %v1524
        %1529 = vst [vmem:[%s217 + $0x4] sm:$0xf] %v1525
        %1530 = vst [vmem:[%s217 + $0x8] sm:$0xf] %v1526
        %1531 = vst [vmem:[%s217 + $0xc] sm:$0xf] %v1527
        %s1532 = sand.u32 %s97, 1
        %s1533 = scalar_lea.sflag [#allocation6], %s1532
        %s1534 = sand.u32 %s97, 1
        %s1535 = smul.addr %s1534, 16
        %s1536 = scalar_lea.vmem [#allocation10], %s1535
        // Predicated region
        $region45: #{patch_embedding_forward.1} parent=31 // pred_check
          %p1537 = pneg %p107
        $region46: #{patch_embedding_forward.1} parent=31 // pred_check_branch
          %1539 = sbr.rel (%p1537) target = $region48
        $region47: #{patch_embedding_forward.1} parent=31 // pred_region
          %s1541 = ssub.s32 256, 256
          %1542 = vsyncadd %s1533, %s1541
          %s1543 = smul.addr %s21, 4
          %s1544 = smul.addr %s1543, 64
          %s1545 = scalar_lea.hbm %s3, %s1544
          %s1546 = sshll.u32 %s1536, 4
          %s1547 = int_to_ptr.vmem [resolvable:$true] %s1546
          %1552 = dma.vmem_to_hbm [thread:$0]  %s1547, 256, %s1545, %s1533, 64, 64, 4
        $region48: #{patch_embedding_forward.1} parent=31 // pred_fallthru
          _
      $region32: #{patch_embedding_forward.1} parent=5 // pred_fallthru
        _
      %p1553 = scmp.le.s32.totalorder 2, %s16
      // Predicated region
      $region49: #{patch_embedding_forward.1} parent=5 // pred_check
        %p1554 = pneg %p1553
      $region50: #{patch_embedding_forward.1} parent=5 // pred_check_branch
        %1556 = sbr.rel (%p1554) target = $region52
      $region51: #{patch_embedding_forward.1} parent=5 // pred_region
        %s1557 = ssub.s32 %s16, 2
        // Predicated region
        $region53: #{patch_embedding_forward.1} parent=51 // pred_check
          %p1558 = pneg %p113
        $region54: #{patch_embedding_forward.1} parent=51 // pred_check_branch
          %1560 = sbr.rel (%p1558) target = $region56
        $region55: #{patch_embedding_forward.1} parent=51 // pred_region
          %s1561 = sand.u32 %s98, 1
          %s1562 = scalar_lea.sflag [#allocation6], %s1561
          %s1563 = sand.u32 %s98, 1
          %s1564 = smul.addr %s1563, 16
          %s1565 = scalar_lea.vmem [#allocation10], %s1564
          %1566 = dma.done %s1562, 256
        $region56: #{patch_embedding_forward.1} parent=51 // pred_fallthru
          _
      $region52: #{patch_embedding_forward.1} parent=5 // pred_fallthru
        _
    $region6: #{patch_embedding_forward.1} parent=1 // loop_footer
      %s20 = sadd.s32 1, %s16
    $region7: #{patch_embedding_forward.1} parent=1 // loop_footer_branch
      %15 = sbr.rel target = $region3
    $region8: #{patch_embedding_forward.1} parent=1 // loop_exit
      _
    %1567 = vsyncpa [#allocation5], 1
    %s1568 = scalar_lea.sflag [#allocation5], 1
    %1569 = vsyncpa %s1568, 1
    %1570 = vsyncpa [#allocation8], 1
    %1571 = vsyncpa [#allocation6], 1
    %s1572 = scalar_lea.sflag [#allocation6], 1
    %1573 = vsyncpa %s1572, 1

</llo_original>
